<compile_context>
chip_gen: v7x
topology: tpu7x:2x2x1
jax: 0.10.0
libtpu: 0.0.40
codegen_flags: <defaults>
</compile_context>

<pallas_src>
import jax
import jax.numpy as jnp
from jax.experimental import pallas as pl
from jax.experimental.pallas import tpu as pltpu

WIDTH = 40


def _phi(t):
    # phi(x) = relu(x) ** 3
    r = jnp.maximum(t, 0.0)
    return r * r * r


def _dgm_kernel(x_ref, w1_ref, b1_ref, wh_ref, bh_ref, w6_ref, b6_ref, o_ref):
    x = x_ref[...]                                  # (1, bn) f32

    # layer1 (1 -> WIDTH): pure VPU broadcast multiply-add (exact f32)
    y = w1_ref[...] * x + b1_ref[...]               # (WIDTH, bn) f32

    def hidden(k, act):
        # Single-pass bf16 MXU dot, f32 accumulation; bias add stays f32.
        return (jnp.dot(wh_ref[k], act.astype(jnp.bfloat16),
                        preferred_element_type=jnp.float32)
                + bh_ref[k])

    # residual block 1: y = y + phi(L3(phi(L2(y))))
    h = _phi(hidden(0, y))
    y = y + _phi(hidden(1, h))

    # residual block 2: y = y + phi(L5(phi(L4(y))))
    h = _phi(hidden(2, y))
    y = y + _phi(hidden(3, h))

    # layer6 (WIDTH -> 1): VPU multiply + sublane (XLU) reduce, no MXU pass
    temp = jnp.sum(w6_ref[...] * y, axis=0, keepdims=True) + b6_ref[...]  # (1, bn)

    o_ref[...] = x * (1.0 - x) * temp


def dgm_forward(x, params, *, block_n=None):
    """x: (N, 1) f32 (PyTorch convention).  Returns (N, 1) f32."""
    N = x.shape[0]

    if block_n is None:
        # Small batches: one grid step.  Large batches: 4096-wide tiles so the
        # ~0.35 us per-step overhead is amortized and v7x's two TCs each get a
        # contiguous chunk of the batch via the "parallel" grid axis.
        n128 = ((N + 127) // 128) * 128
        block_n = n128 if n128 <= 4096 else 4096

    n_pad = ((N + block_n - 1) // block_n) * block_n
    xr = x.reshape(1, N).astype(jnp.float32)
    if n_pad != N:
        xr = jnp.pad(xr, ((0, 0), (0, n_pad - N)))

    w1, b1 = params["w1"], params["b1"]                  # (W,1), (W,1) f32
    wh = params["wh"].astype(jnp.bfloat16)               # (4,W,W) bf16 (MXU operands)
    bh = params["bh"]                                    # (4,W,1) f32
    w6, b6 = params["w6"], params["b6"]                  # (W,1), (1,1) f32

    grid = (n_pad // block_n,)

    def full_spec(arr):
        nd = arr.ndim
        # Constant index_map: the weight tile is never re-DMA'd across steps.
        return pl.BlockSpec(arr.shape, lambda i, _nd=nd: (0,) * _nd)

    in_specs = [
        pl.BlockSpec((1, block_n), lambda i: (0, i)),    # x (lane-dense tile)
        full_spec(w1), full_spec(b1),
        full_spec(wh), full_spec(bh),
        full_spec(w6), full_spec(b6),
    ]
    out_spec = pl.BlockSpec((1, block_n), lambda i: (0, i))

    weight_bytes = (4 * (w1.size + b1.size + bh.size + w6.size + b6.size)
                    + 2 * wh.size)
    cost = pl.CostEstimate(
        flops=2 * 4 * WIDTH * WIDTH * n_pad + 10 * WIDTH * n_pad,
        transcendentals=0,
        bytes_accessed=8 * n_pad + weight_bytes,
    )

    out = pl.pallas_call(
        _dgm_kernel,
        out_shape=jax.ShapeDtypeStruct((1, n_pad), jnp.float32),
        grid_spec=pltpu.PrefetchScalarGridSpec(
            num_scalar_prefetch=0,
            grid=grid,
            in_specs=in_specs,
            out_specs=out_spec,
        ),
        compiler_params=pltpu.CompilerParams(
            dimension_semantics=("parallel",),
        ),
        cost_estimate=cost,
    )(xr, w1, b1, wh, bh, w6, b6)

    return out[0, :N].reshape(N, 1)


def init_params(key, width=WIDTH):
    """Deterministic init mimicking torch.nn.Linear default (U[-1/sqrt(fan_in), +]).

    Weights are stored feature-major: (out_features, in_features), biases (out, 1).
    """
    keys = jax.random.split(key, 12)

    def linear(kw, kb, fin, fout):
        bound = 1.0 / (fin ** 0.5)
        w = jax.random.uniform(kw, (fout, fin), jnp.float32, -bound, bound)
        b = jax.random.uniform(kb, (fout, 1), jnp.float32, -bound, bound)
        return w, b

    w1, b1 = linear(keys[0], keys[1], 1, width)
    w2, b2 = linear(keys[2], keys[3], width, width)
    w3, b3 = linear(keys[4], keys[5], width, width)
    w4, b4 = linear(keys[6], keys[7], width, width)
    w5, b5 = linear(keys[8], keys[9], width, 1 * width)
    w6, b6 = linear(keys[10], keys[11], width, 1)

    return {
        "w1": w1, "b1": b1,                       # (W,1), (W,1)
        "wh": jnp.stack([w2, w3, w4, w5]),        # (4, W, W)
        "bh": jnp.stack([b2, b3, b4, b5]),        # (4, W, 1)
        "w6": w6.T,                               # (W, 1)
        "b6": b6,                                 # (1, 1)
    }


def reference_forward(x, params, *, matmul_dtype=jnp.float32):
    """Plain-JAX reference (batch-major).

    matmul_dtype=jnp.bfloat16 mirrors the kernel's MXU precision (operands in
    bf16, f32 accumulation); jnp.float32 gives the full-precision reference.
    """
    def phi(t):
        r = jnp.maximum(t, 0.0)
        return r ** 3

    w1, b1 = params["w1"], params["b1"]
    wh = params["wh"].astype(matmul_dtype)
    bh = params["bh"]
    w6, b6 = params["w6"], params["b6"]

    def hid(k, a):
        return (jnp.dot(a.astype(matmul_dtype), wh[k].T,
                        preferred_element_type=jnp.float32) + bh[k].T)

    y = x @ w1.T + b1.T                                     # (N, W)
    y = y + phi(hid(1, phi(hid(0, y))))
    y = y + phi(hid(3, phi(hid(2, y))))
    temp = y @ w6 + b6                                      # (N, 1)
    return x * (1.0 - x) * temp


if __name__ == "__main__":
    key = jax.random.PRNGKey(0)
    pkey, xkey = jax.random.split(key)

    params = init_params(pkey, WIDTH)

    N = 1024
    x = jax.random.uniform(xkey, (N, 1), jnp.float32)  # samples in [0, 1)

    out = dgm_forward(x, params)                       # single grid step at this N
    out = jax.block_until_ready(out)
    assert out.shape == (N, 1)

    # Tight check against a reference that matches the kernel's MXU precision
    # (bf16 operands, f32 accumulation) — verifies the kernel logic itself.
    ref_bf16 = reference_forward(x, params, matmul_dtype=jnp.bfloat16)
    assert jnp.allclose(out, ref_bf16, atol=2e-3, rtol=2e-3), "mismatch vs bf16-matched reference"

    # Loose sanity check against the full-f32 reference (bf16 matmul inputs
    # introduce ~1e-2 relative deviation through the width-40 relu^3 chain).
    ref_f32 = reference_forward(x, params, matmul_dtype=jnp.float32)
    assert jnp.allclose(out, ref_f32, atol=1e-1, rtol=1e-1), "gross mismatch vs f32 reference"

    print("KERNEL_OK")
</pallas_src>

<mosaic_0001>
module attributes {stable_mosaic.version = 11 : i64} {
  func.func @_dgm_kernel(%arg0: i32, %arg1: memref<1x1024xf32, #tpu.memory_space<vmem>>, %arg2: memref<40x1xf32, #tpu.memory_space<vmem>>, %arg3: memref<40x1xf32, #tpu.memory_space<vmem>>, %arg4: memref<4x40x40xbf16, #tpu.memory_space<vmem>>, %arg5: memref<4x40x1xf32, #tpu.memory_space<vmem>>, %arg6: memref<40x1xf32, #tpu.memory_space<vmem>>, %arg7: memref<1x1xf32, #tpu.memory_space<vmem>>, %arg8: memref<1x1024xf32, #tpu.memory_space<vmem>>) attributes {dimension_semantics = [#tpu.dimension_semantics<parallel>], iteration_bounds = array<i64: 1>, scalar_prefetch = 0 : i64, scratch_operands = 0 : i64, tpu.core_type = #tpu.core_type<tc>, window_params = [{transform_indices = @transform_0, window_bounds = array<i64: 1, 1024>}, {pipeline_mode = #tpu.pipeline_mode<synchronous>, transform_indices = @transform_1, window_bounds = array<i64: 40, 1>}, {pipeline_mode = #tpu.pipeline_mode<synchronous>, transform_indices = @transform_2, window_bounds = array<i64: 40, 1>}, {pipeline_mode = #tpu.pipeline_mode<synchronous>, transform_indices = @transform_3, window_bounds = array<i64: 4, 40, 40>}, {pipeline_mode = #tpu.pipeline_mode<synchronous>, transform_indices = @transform_4, window_bounds = array<i64: 4, 40, 1>}, {pipeline_mode = #tpu.pipeline_mode<synchronous>, transform_indices = @transform_5, window_bounds = array<i64: 40, 1>}, {pipeline_mode = #tpu.pipeline_mode<synchronous>, transform_indices = @transform_6, window_bounds = array<i64: 1, 1>}, {transform_indices = @transform_7, window_bounds = array<i64: 1, 1024>}]} {
    %c0 = arith.constant 0 : index
    %c0_0 = arith.constant 0 : index
    %0 = vector.load %arg1[%c0, %c0_0] : memref<1x1024xf32, #tpu.memory_space<vmem>>, vector<1x1024xf32>
    %c0_1 = arith.constant 0 : index
    %c0_2 = arith.constant 0 : index
    %1 = vector.load %arg2[%c0_1, %c0_2] : memref<40x1xf32, #tpu.memory_space<vmem>>, vector<40x1xf32>
    %2 = vector.broadcast %1 : vector<40x1xf32> to vector<40x1024xf32>
    %3 = vector.broadcast %0 : vector<1x1024xf32> to vector<40x1024xf32>
    %4 = arith.mulf %2, %3 : vector<40x1024xf32>
    %c0_3 = arith.constant 0 : index
    %c0_4 = arith.constant 0 : index
    %5 = vector.load %arg3[%c0_3, %c0_4] : memref<40x1xf32, #tpu.memory_space<vmem>>, vector<40x1xf32>
    %6 = vector.broadcast %5 : vector<40x1xf32> to vector<40x1024xf32>
    %7 = arith.addf %4, %6 : vector<40x1024xf32>
    %c0_5 = arith.constant 0 : index
    %c0_6 = arith.constant 0 : index
    %c0_7 = arith.constant 0 : index
    %8 = vector.load %arg4[%c0_5, %c0_6, %c0_7] : memref<4x40x40xbf16, #tpu.memory_space<vmem>>, vector<1x40x40xbf16>
    %9 = vector.shape_cast %8 : vector<1x40x40xbf16> to vector<40x40xbf16>
    %10 = arith.truncf %7 : vector<40x1024xf32> to vector<40x1024xbf16>
    %cst = arith.constant dense<0.000000e+00> : vector<40x1024xf32>
    %11 = tpu.matmul %9, %10, %cst {dimension_numbers = #tpu.dot_dimension_numbers<[1], [0], [0], [1], [0, 0, 1, 1], [], []>} : vector<40x40xbf16>, vector<40x1024xbf16>, vector<40x1024xf32> -> vector<40x1024xf32>
    %c0_8 = arith.constant 0 : index
    %c0_9 = arith.constant 0 : index
    %c0_10 = arith.constant 0 : index
    %12 = vector.load %arg5[%c0_8, %c0_9, %c0_10] : memref<4x40x1xf32, #tpu.memory_space<vmem>>, vector<1x40x1xf32>
    %13 = vector.shape_cast %12 : vector<1x40x1xf32> to vector<40x1xf32>
    %14 = vector.broadcast %13 : vector<40x1xf32> to vector<40x1024xf32>
    %15 = arith.addf %11, %14 : vector<40x1024xf32>
    %cst_11 = arith.constant 0.000000e+00 : f32
    %16 = vector.broadcast %cst_11 : f32 to vector<40x1024xf32>
    %17 = arith.maximumf %15, %16 : vector<40x1024xf32>
    %18 = arith.mulf %17, %17 : vector<40x1024xf32>
    %19 = arith.mulf %18, %17 : vector<40x1024xf32>
    %c1 = arith.constant 1 : index
    %c0_12 = arith.constant 0 : index
    %c0_13 = arith.constant 0 : index
    %20 = vector.load %arg4[%c1, %c0_12, %c0_13] : memref<4x40x40xbf16, #tpu.memory_space<vmem>>, vector<1x40x40xbf16>
    %21 = vector.shape_cast %20 : vector<1x40x40xbf16> to vector<40x40xbf16>
    %22 = arith.truncf %19 : vector<40x1024xf32> to vector<40x1024xbf16>
    %cst_14 = arith.constant dense<0.000000e+00> : vector<40x1024xf32>
    %23 = tpu.matmul %21, %22, %cst_14 {dimension_numbers = #tpu.dot_dimension_numbers<[1], [0], [0], [1], [0, 0, 1, 1], [], []>} : vector<40x40xbf16>, vector<40x1024xbf16>, vector<40x1024xf32> -> vector<40x1024xf32>
    %c1_15 = arith.constant 1 : index
    %c0_16 = arith.constant 0 : index
    %c0_17 = arith.constant 0 : index
    %24 = vector.load %arg5[%c1_15, %c0_16, %c0_17] : memref<4x40x1xf32, #tpu.memory_space<vmem>>, vector<1x40x1xf32>
    %25 = vector.shape_cast %24 : vector<1x40x1xf32> to vector<40x1xf32>
    %26 = vector.broadcast %25 : vector<40x1xf32> to vector<40x1024xf32>
    %27 = arith.addf %23, %26 : vector<40x1024xf32>
    %cst_18 = arith.constant 0.000000e+00 : f32
    %28 = vector.broadcast %cst_18 : f32 to vector<40x1024xf32>
    %29 = arith.maximumf %27, %28 : vector<40x1024xf32>
    %30 = arith.mulf %29, %29 : vector<40x1024xf32>
    %31 = arith.mulf %30, %29 : vector<40x1024xf32>
    %32 = arith.addf %7, %31 : vector<40x1024xf32>
    %c2 = arith.constant 2 : index
    %c0_19 = arith.constant 0 : index
    %c0_20 = arith.constant 0 : index
    %33 = vector.load %arg4[%c2, %c0_19, %c0_20] : memref<4x40x40xbf16, #tpu.memory_space<vmem>>, vector<1x40x40xbf16>
    %34 = vector.shape_cast %33 : vector<1x40x40xbf16> to vector<40x40xbf16>
    %35 = arith.truncf %32 : vector<40x1024xf32> to vector<40x1024xbf16>
    %cst_21 = arith.constant dense<0.000000e+00> : vector<40x1024xf32>
    %36 = tpu.matmul %34, %35, %cst_21 {dimension_numbers = #tpu.dot_dimension_numbers<[1], [0], [0], [1], [0, 0, 1, 1], [], []>} : vector<40x40xbf16>, vector<40x1024xbf16>, vector<40x1024xf32> -> vector<40x1024xf32>
    %c2_22 = arith.constant 2 : index
    %c0_23 = arith.constant 0 : index
    %c0_24 = arith.constant 0 : index
    %37 = vector.load %arg5[%c2_22, %c0_23, %c0_24] : memref<4x40x1xf32, #tpu.memory_space<vmem>>, vector<1x40x1xf32>
    %38 = vector.shape_cast %37 : vector<1x40x1xf32> to vector<40x1xf32>
    %39 = vector.broadcast %38 : vector<40x1xf32> to vector<40x1024xf32>
    %40 = arith.addf %36, %39 : vector<40x1024xf32>
    %cst_25 = arith.constant 0.000000e+00 : f32
    %41 = vector.broadcast %cst_25 : f32 to vector<40x1024xf32>
    %42 = arith.maximumf %40, %41 : vector<40x1024xf32>
    %43 = arith.mulf %42, %42 : vector<40x1024xf32>
    %44 = arith.mulf %43, %42 : vector<40x1024xf32>
    %c3 = arith.constant 3 : index
    %c0_26 = arith.constant 0 : index
    %c0_27 = arith.constant 0 : index
    %45 = vector.load %arg4[%c3, %c0_26, %c0_27] : memref<4x40x40xbf16, #tpu.memory_space<vmem>>, vector<1x40x40xbf16>
    %46 = vector.shape_cast %45 : vector<1x40x40xbf16> to vector<40x40xbf16>
    %47 = arith.truncf %44 : vector<40x1024xf32> to vector<40x1024xbf16>
    %cst_28 = arith.constant dense<0.000000e+00> : vector<40x1024xf32>
    %48 = tpu.matmul %46, %47, %cst_28 {dimension_numbers = #tpu.dot_dimension_numbers<[1], [0], [0], [1], [0, 0, 1, 1], [], []>} : vector<40x40xbf16>, vector<40x1024xbf16>, vector<40x1024xf32> -> vector<40x1024xf32>
    %c3_29 = arith.constant 3 : index
    %c0_30 = arith.constant 0 : index
    %c0_31 = arith.constant 0 : index
    %49 = vector.load %arg5[%c3_29, %c0_30, %c0_31] : memref<4x40x1xf32, #tpu.memory_space<vmem>>, vector<1x40x1xf32>
    %50 = vector.shape_cast %49 : vector<1x40x1xf32> to vector<40x1xf32>
    %51 = vector.broadcast %50 : vector<40x1xf32> to vector<40x1024xf32>
    %52 = arith.addf %48, %51 : vector<40x1024xf32>
    %cst_32 = arith.constant 0.000000e+00 : f32
    %53 = vector.broadcast %cst_32 : f32 to vector<40x1024xf32>
    %54 = arith.maximumf %52, %53 : vector<40x1024xf32>
    %55 = arith.mulf %54, %54 : vector<40x1024xf32>
    %56 = arith.mulf %55, %54 : vector<40x1024xf32>
    %57 = arith.addf %32, %56 : vector<40x1024xf32>
    %c0_33 = arith.constant 0 : index
    %c0_34 = arith.constant 0 : index
    %58 = vector.load %arg6[%c0_33, %c0_34] : memref<40x1xf32, #tpu.memory_space<vmem>>, vector<40x1xf32>
    %59 = vector.broadcast %58 : vector<40x1xf32> to vector<40x1024xf32>
    %60 = arith.mulf %59, %57 : vector<40x1024xf32>
    %cst_35 = arith.constant dense<0.000000e+00> : vector<1024xf32>
    %61 = vector.multi_reduction <add>, %60, %cst_35 [0] : vector<40x1024xf32> to vector<1024xf32>
    %62 = vector.shape_cast %61 : vector<1024xf32> to vector<1x1024xf32>
    %c0_36 = arith.constant 0 : index
    %c0_37 = arith.constant 0 : index
    %63 = vector.load %arg7[%c0_36, %c0_37] : memref<1x1xf32, #tpu.memory_space<vmem>>, vector<1x1xf32>
    %64 = vector.broadcast %63 : vector<1x1xf32> to vector<1x1024xf32>
    %65 = arith.addf %62, %64 : vector<1x1024xf32>
    %cst_38 = arith.constant 1.000000e+00 : f32
    %66 = vector.broadcast %cst_38 : f32 to vector<1x1024xf32>
    %67 = arith.subf %66, %0 : vector<1x1024xf32>
    %68 = arith.mulf %0, %67 : vector<1x1024xf32>
    %69 = arith.mulf %68, %65 : vector<1x1024xf32>
    %c0_39 = arith.constant 0 : index
    %c0_40 = arith.constant 0 : index
    %70 = vector.load %arg8[%c0_39, %c0_40] : memref<1x1024xf32, #tpu.memory_space<vmem>>, vector<1x1024xf32>
    tpu.vector_store %arg8[%c0_39, %c0_40], %69 {strides = array<i32>} : memref<1x1024xf32, #tpu.memory_space<vmem>>, vector<1x1024xf32>,
    return
  }
  func.func @transform_0(%arg0: i32) -> (i32, i32) {
    %c0_i32 = arith.constant 0 : i32
    %c0_i32_0 = arith.constant 0 : i32
    return %c0_i32, %arg0 : i32, i32
  }
  func.func @transform_1(%arg0: i32) -> (i32, i32) {
    %c0_i32 = arith.constant 0 : i32
    %c0_i32_0 = arith.constant 0 : i32
    %c0_i32_1 = arith.constant 0 : i32
    return %c0_i32, %c0_i32_0 : i32, i32
  }
  func.func @transform_2(%arg0: i32) -> (i32, i32) {
    %c0_i32 = arith.constant 0 : i32
    %c0_i32_0 = arith.constant 0 : i32
    %c0_i32_1 = arith.constant 0 : i32
    return %c0_i32, %c0_i32_0 : i32, i32
  }
  func.func @transform_3(%arg0: i32) -> (i32, i32, i32) {
    %c0_i32 = arith.constant 0 : i32
    %c0_i32_0 = arith.constant 0 : i32
    %c0_i32_1 = arith.constant 0 : i32
    %c0_i32_2 = arith.constant 0 : i32
    return %c0_i32, %c0_i32_0, %c0_i32_1 : i32, i32, i32
  }
  func.func @transform_4(%arg0: i32) -> (i32, i32, i32) {
    %c0_i32 = arith.constant 0 : i32
    %c0_i32_0 = arith.constant 0 : i32
    %c0_i32_1 = arith.constant 0 : i32
    %c0_i32_2 = arith.constant 0 : i32
    return %c0_i32, %c0_i32_0, %c0_i32_1 : i32, i32, i32
  }
  func.func @transform_5(%arg0: i32) -> (i32, i32) {
    %c0_i32 = arith.constant 0 : i32
    %c0_i32_0 = arith.constant 0 : i32
    %c0_i32_1 = arith.constant 0 : i32
    return %c0_i32, %c0_i32_0 : i32, i32
  }
  func.func @transform_6(%arg0: i32) -> (i32, i32) {
    %c0_i32 = arith.constant 0 : i32
    %c0_i32_0 = arith.constant 0 : i32
    %c0_i32_1 = arith.constant 0 : i32
    return %c0_i32, %c0_i32_0 : i32, i32
  }
  func.func @transform_7(%arg0: i32) -> (i32, i32) {
    %c0_i32 = arith.constant 0 : i32
    %c0_i32_0 = arith.constant 0 : i32
    return %c0_i32, %arg0 : i32, i32
  }
}

</mosaic_0001>

<llo_original>
// kernel: tpu_custom_call.1
$region0: #{tpu_custom_call.1}
  #allocation0 [shape = 'u32[]', space=smem, size = 0x4, offset = 0x4, fixed_abs, tag = 'smem constant byte address 0x4 - core index']
  #allocation1 [shape = 'u32[144,128]{1,0:T(1,128)}', space=vmem, size = 0x12000, scoped, tag = 'internal scratch']
  #allocation2 [shape = 'f32[1,1]{1,0:T(1,128)S(1)}', space=vmem, size = 0x200, scoped, tag = 'scoped memory for tpu_custom_call.1']
  %s0 = inlined_call_operand.vmem [shape: f32[1,1024], index: 0, kind: input, shape index: {}]
  %s1 = inlined_call_operand.vmem [shape: f32[40,1], index: 1, kind: input, shape index: {}]
  %s2 = inlined_call_operand.vmem [shape: f32[40,1], index: 2, kind: input, shape index: {}]
  %s3 = inlined_call_operand.vmem [shape: bf16[4,40,40], index: 3, kind: input, shape index: {}]
  %s4 = inlined_call_operand.vmem [shape: f32[4,40,1], index: 4, kind: input, shape index: {}]
  %s5 = inlined_call_operand.vmem [shape: f32[40,1], index: 5, kind: input, shape index: {}]
  %s6 = inlined_call_operand.<no memory space> [shape: f32[1,1], index: 6, kind: input, shape index: {}]
  %s7 = inlined_call_operand.hbm [shape: f32[1,1024], index: 7, kind: output, shape index: {}]
  %s8 = sld [smem:[#allocation0]]
  $region38: #{tpu_custom_call.1} parent=0
    _
  %s10 = ssub.s32 1, %s8
  %s11 = scalar_select 0, %s10, %s8
  %v12 = vstv %s6
  %13 = vst [vmem:[#allocation2] sm:$0x1] %v12
  $region1: #{tpu_custom_call.1} parent=0
    #allocation3 [shape = 'u8[4096]{0}', space=vmem, size = 0x1000, scoped, tag = 'output window, operand 0, single buffered']
    #allocation4 [shape = 's32[1]{0}', space=sflag, size = 0x4, scoped, tag = 'scoped memory for tpu_custom_call.1']
    %14 = vsyncpa [#allocation4], 0
    // Predicated region
    $region2: #{tpu_custom_call.1} parent=1 // pred_check
      _
    $region3: #{tpu_custom_call.1} parent=1 // pred_check_branch
      %16 = sbr.rel (0) target = $region5
    $region4: #{tpu_custom_call.1} parent=1 // pred_region
      _
    $region5: #{tpu_custom_call.1} parent=1 // pred_fallthru
      _
    // Predicated region
    $region6: #{tpu_custom_call.1} parent=1 // pred_check
      _
    $region7: #{tpu_custom_call.1} parent=1 // pred_check_branch
      %18 = sbr.rel (0) target = $region9
    $region8: #{tpu_custom_call.1} parent=1 // pred_region
      _
    $region9: #{tpu_custom_call.1} parent=1 // pred_fallthru
      _
    // Predicated region
    $region10: #{tpu_custom_call.1} parent=1 // pred_check
      _
    $region11: #{tpu_custom_call.1} parent=1 // pred_check_branch
      %20 = sbr.rel (0) target = $region13
    $region12: #{tpu_custom_call.1} parent=1 // pred_region
      _
    $region13: #{tpu_custom_call.1} parent=1 // pred_fallthru
      _
    // Predicated region
    $region14: #{tpu_custom_call.1} parent=1 // pred_check
      _
    $region15: #{tpu_custom_call.1} parent=1 // pred_check_branch
      %22 = sbr.rel (0) target = $region17
    $region16: #{tpu_custom_call.1} parent=1 // pred_region
      _
    $region17: #{tpu_custom_call.1} parent=1 // pred_fallthru
      _
    // Predicated region
    $region18: #{tpu_custom_call.1} parent=1 // pred_check
      _
    $region19: #{tpu_custom_call.1} parent=1 // pred_check_branch
      %24 = sbr.rel (0) target = $region21
    $region20: #{tpu_custom_call.1} parent=1 // pred_region
      _
    $region21: #{tpu_custom_call.1} parent=1 // pred_fallthru
      _
    // Predicated region
    $region22: #{tpu_custom_call.1} parent=1 // pred_check
      _
    $region23: #{tpu_custom_call.1} parent=1 // pred_check_branch
      %26 = sbr.rel (0) target = $region25
    $region24: #{tpu_custom_call.1} parent=1 // pred_region
      _
    $region25: #{tpu_custom_call.1} parent=1 // pred_fallthru
      _
    // Predicated region
    $region26: #{tpu_custom_call.1} parent=1 // pred_check
      _
    $region27: #{tpu_custom_call.1} parent=1 // pred_check_branch
      %28 = sbr.rel (0) target = $region29
    $region28: #{tpu_custom_call.1} parent=1 // pred_region
      _
    $region29: #{tpu_custom_call.1} parent=1 // pred_fallthru
      _
    %v30 = vld [vmem:[%s0] sm:$0xff]
    %v31 = vld [vmem:[%s1] sm:$0xff]
    %v32 = vld [vmem:[%s1 + $0x8] sm:$0xff]
    %v33 = vld [vmem:[%s1 + $0x10] sm:$0xff]
    %v34 = vld [vmem:[%s1 + $0x18] sm:$0xff]
    %v35 = vld [vmem:[%s1 + $0x20] sm:$0xff]
    %37 = vset.pattern.permute.xlu0 0
    %38 = vperm.xlu0 %37, %v31
    %v39 = vpop.permute.xlu0 %38
    %42 = vset.pattern.permute.xlu0 0
    %43 = vperm.xlu0 %42, %v32
    %v44 = vpop.permute.xlu0 %43
    %47 = vset.pattern.permute.xlu0 0
    %48 = vperm.xlu0 %47, %v33
    %v49 = vpop.permute.xlu0 %48
    %52 = vset.pattern.permute.xlu0 0
    %53 = vperm.xlu0 %52, %v34
    %v54 = vpop.permute.xlu0 %53
    %57 = vset.pattern.permute.xlu0 0
    %58 = vperm.xlu0 %57, %v35
    %v59 = vpop.permute.xlu0 %58
    %v62 = vlaneseq
    %v63 = vshrl.u32 %v62, 7
    %v64 = vsub.s32 0, %v63
    %v65 = vrot.slane %v30, %v64
    %v66 = vlaneseq
    %v67 = vshrl.u32 %v66, 7
    %v68 = vsub.s32 1, %v67
    %v69 = vrot.slane %v30, %v68
    %v70 = vlaneseq
    %v71 = vshrl.u32 %v70, 7
    %v72 = vsub.s32 2, %v71
    %v73 = vrot.slane %v30, %v72
    %v74 = vlaneseq
    %v75 = vshrl.u32 %v74, 7
    %v76 = vsub.s32 3, %v75
    %v77 = vrot.slane %v30, %v76
    %v78 = vlaneseq
    %v79 = vshrl.u32 %v78, 7
    %v80 = vsub.s32 4, %v79
    %v81 = vrot.slane %v30, %v80
    %v82 = vlaneseq
    %v83 = vshrl.u32 %v82, 7
    %v84 = vsub.s32 5, %v83
    %v85 = vrot.slane %v30, %v84
    %v86 = vlaneseq
    %v87 = vshrl.u32 %v86, 7
    %v88 = vsub.s32 6, %v87
    %v89 = vrot.slane %v30, %v88
    %v90 = vlaneseq
    %v91 = vshrl.u32 %v90, 7
    %v92 = vsub.s32 7, %v91
    %v93 = vrot.slane %v30, %v92
    %v102 = vmul.f32 %v39, %v65
    %v103 = vmul.f32 %v39, %v69
    %v104 = vmul.f32 %v39, %v73
    %v105 = vmul.f32 %v39, %v77
    %v106 = vmul.f32 %v39, %v81
    %v107 = vmul.f32 %v39, %v85
    %v108 = vmul.f32 %v39, %v89
    %v109 = vmul.f32 %v39, %v93
    %v110 = vmul.f32 %v44, %v65
    %v111 = vmul.f32 %v44, %v69
    %v112 = vmul.f32 %v44, %v73
    %v113 = vmul.f32 %v44, %v77
    %v114 = vmul.f32 %v44, %v81
    %v115 = vmul.f32 %v44, %v85
    %v116 = vmul.f32 %v44, %v89
    %v117 = vmul.f32 %v44, %v93
    %v118 = vmul.f32 %v49, %v65
    %v119 = vmul.f32 %v49, %v69
    %v120 = vmul.f32 %v49, %v73
    %v121 = vmul.f32 %v49, %v77
    %v122 = vmul.f32 %v49, %v81
    %v123 = vmul.f32 %v49, %v85
    %v124 = vmul.f32 %v49, %v89
    %v125 = vmul.f32 %v49, %v93
    %v126 = vmul.f32 %v54, %v65
    %v127 = vmul.f32 %v54, %v69
    %v128 = vmul.f32 %v54, %v73
    %v129 = vmul.f32 %v54, %v77
    %v130 = vmul.f32 %v54, %v81
    %v131 = vmul.f32 %v54, %v85
    %v132 = vmul.f32 %v54, %v89
    %v133 = vmul.f32 %v54, %v93
    %v134 = vmul.f32 %v59, %v65
    %v135 = vmul.f32 %v59, %v69
    %v136 = vmul.f32 %v59, %v73
    %v137 = vmul.f32 %v59, %v77
    %v138 = vmul.f32 %v59, %v81
    %v139 = vmul.f32 %v59, %v85
    %v140 = vmul.f32 %v59, %v89
    %v141 = vmul.f32 %v59, %v93
    %v142 = vld [vmem:[%s2] sm:$0xff]
    %v143 = vld [vmem:[%s2 + $0x8] sm:$0xff]
    %v144 = vld [vmem:[%s2 + $0x10] sm:$0xff]
    %v145 = vld [vmem:[%s2 + $0x18] sm:$0xff]
    %v146 = vld [vmem:[%s2 + $0x20] sm:$0xff]
    %148 = vset.pattern.permute.xlu0 0
    %149 = vperm.xlu0 %148, %v142
    %v150 = vpop.permute.xlu0 %149
    %153 = vset.pattern.permute.xlu0 0
    %154 = vperm.xlu0 %153, %v143
    %v155 = vpop.permute.xlu0 %154
    %158 = vset.pattern.permute.xlu0 0
    %159 = vperm.xlu0 %158, %v144
    %v160 = vpop.permute.xlu0 %159
    %163 = vset.pattern.permute.xlu0 0
    %164 = vperm.xlu0 %163, %v145
    %v165 = vpop.permute.xlu0 %164
    %168 = vset.pattern.permute.xlu0 0
    %169 = vperm.xlu0 %168, %v146
    %v170 = vpop.permute.xlu0 %169
    %v172 = vadd.f32 %v102, %v150
    %v173 = vadd.f32 %v103, %v150
    %v174 = vadd.f32 %v104, %v150
    %v175 = vadd.f32 %v105, %v150
    %v176 = vadd.f32 %v106, %v150
    %v177 = vadd.f32 %v107, %v150
    %v178 = vadd.f32 %v108, %v150
    %v179 = vadd.f32 %v109, %v150
    %v180 = vadd.f32 %v110, %v155
    %v181 = vadd.f32 %v111, %v155
    %v182 = vadd.f32 %v112, %v155
    %v183 = vadd.f32 %v113, %v155
    %v184 = vadd.f32 %v114, %v155
    %v185 = vadd.f32 %v115, %v155
    %v186 = vadd.f32 %v116, %v155
    %v187 = vadd.f32 %v117, %v155
    %v188 = vadd.f32 %v118, %v160
    %v189 = vadd.f32 %v119, %v160
    %v190 = vadd.f32 %v120, %v160
    %v191 = vadd.f32 %v121, %v160
    %v192 = vadd.f32 %v122, %v160
    %v193 = vadd.f32 %v123, %v160
    %v194 = vadd.f32 %v124, %v160
    %v195 = vadd.f32 %v125, %v160
    %v196 = vadd.f32 %v126, %v165
    %v197 = vadd.f32 %v127, %v165
    %v198 = vadd.f32 %v128, %v165
    %v199 = vadd.f32 %v129, %v165
    %v200 = vadd.f32 %v130, %v165
    %v201 = vadd.f32 %v131, %v165
    %v202 = vadd.f32 %v132, %v165
    %v203 = vadd.f32 %v133, %v165
    %v204 = vadd.f32 %v134, %v170
    %v205 = vadd.f32 %v135, %v170
    %v206 = vadd.f32 %v136, %v170
    %v207 = vadd.f32 %v137, %v170
    %v208 = vadd.f32 %v138, %v170
    %v209 = vadd.f32 %v139, %v170
    %v210 = vadd.f32 %v140, %v170
    %v211 = vadd.f32 %v141, %v170
    %v212 = vld [vmem:[%s3] sm:$0xf]
    %v213 = vld [vmem:[%s3 + $0x4] sm:$0xf]
    %v214 = vld [vmem:[%s3 + $0x8] sm:$0xf]
    %v215 = vld [vmem:[%s3 + $0xc] sm:$0xf]
    %v216 = vld [vmem:[%s3 + $0x10] sm:$0xf]
    %v217 = vpack.c.bf16 %v180, %v172
    %v218 = vpack.c.bf16 %v181, %v173
    %v219 = vpack.c.bf16 %v182, %v174
    %v220 = vpack.c.bf16 %v183, %v175
    %v221 = vpack.c.bf16 %v184, %v176
    %v222 = vpack.c.bf16 %v185, %v177
    %v223 = vpack.c.bf16 %v186, %v178
    %v224 = vpack.c.bf16 %v187, %v179
    %v225 = vpack.c.bf16 %v196, %v188
    %v226 = vpack.c.bf16 %v197, %v189
    %v227 = vpack.c.bf16 %v198, %v190
    %v228 = vpack.c.bf16 %v199, %v191
    %v229 = vpack.c.bf16 %v200, %v192
    %v230 = vpack.c.bf16 %v201, %v193
    %v231 = vpack.c.bf16 %v202, %v194
    %v232 = vpack.c.bf16 %v203, %v195
    %v233 = vpack.c.bf16 %v204, %v204
    %v234 = vpack.c.bf16 %v205, %v205
    %v235 = vpack.c.bf16 %v206, %v206
    %v236 = vpack.c.bf16 %v207, %v207
    %v237 = vpack.c.bf16 %v208, %v208
    %v238 = vpack.c.bf16 %v209, %v209
    %v239 = vpack.c.bf16 %v210, %v210
    %v240 = vpack.c.bf16 %v211, %v211
    %v241 = vld [vmem:[%s4] sm:$0xff]
    %v242 = vld [vmem:[%s4 + $0x8] sm:$0xff]
    %v243 = vld [vmem:[%s4 + $0x10] sm:$0xff]
    %v244 = vld [vmem:[%s4 + $0x18] sm:$0xff]
    %v245 = vld [vmem:[%s4 + $0x20] sm:$0xff]
    %247 = vset.pattern.permute.xlu0 0
    %248 = vperm.xlu0 %247, %v241
    %v249 = vpop.permute.xlu0 %248
    %252 = vset.pattern.permute.xlu0 0
    %253 = vperm.xlu0 %252, %v242
    %v254 = vpop.permute.xlu0 %253
    %257 = vset.pattern.permute.xlu0 0
    %258 = vperm.xlu0 %257, %v243
    %v259 = vpop.permute.xlu0 %258
    %262 = vset.pattern.permute.xlu0 0
    %263 = vperm.xlu0 %262, %v244
    %v264 = vpop.permute.xlu0 %263
    %267 = vset.pattern.permute.xlu0 0
    %268 = vperm.xlu0 %267, %v245
    %v269 = vpop.permute.xlu0 %268
    %v276 = vunpack.c.l.b16 %v212
    %v277 = vunpack.c.l.b16 %v213
    %v278 = vunpack.c.l.b16 %v214
    %v279 = vunpack.c.l.b16 %v215
    %v280 = vunpack.c.l.b16 %v216
    %v281 = vpack.c.b16 %v277, %v276
    %v282 = vpack.c.b16 %v279, %v278
    %v283 = vpack.c.b16 %v280, %v280
    %vm284 = vcmask 326656
    %v286 = vsel %vm284, %v281, 0
    %v289 = vsel %vm284, %v282, 0
    %v292 = vsel %vm284, %v283, 0
    %vm294 = vcmask 1043456
    %v296 = vsel %vm294, %v233, 0
    %v299 = vsel %vm294, %v234, 0
    %v302 = vsel %vm294, %v235, 0
    %v305 = vsel %vm294, %v236, 0
    %v308 = vsel %vm294, %v237, 0
    %v311 = vsel %vm294, %v238, 0
    %v314 = vsel %vm294, %v239, 0
    %v317 = vsel %vm294, %v240, 0
    %319 = vmatprep.subr.bf16.mxu0 %v218
    %320 = vmatpush1.bf16.msra.mxu0 %v217
    %321 = vmatprep.subr.bf16.mxu0 %v226
    %322 = vmatpush1.bf16.msra.mxu0 %v225
    %323 = vmatprep.subr.bf16.mxu0 %v299
    %324 = vmatpush1.bf16.msra.mxu0 %v296
    %325 = vmatprep.subr.bf16.mxu0 0
    %326 = vmatpush1.bf16.msra.mxu0 0
    %327 = vmatprep.subr.bf16.mxu0 0
    %328 = vmatpush1.bf16.msra.mxu0 0
    %329 = vmatprep.subr.bf16.mxu0 0
    %330 = vmatpush1.bf16.msra.mxu0 0
    %331 = vmatprep.subr.bf16.mxu0 0
    %332 = vmatpush1.bf16.msra.mxu0 0
    %333 = vmatprep.subr.bf16.mxu0 0
    %334 = vmatpush1.bf16.msra.mxu0 0
    %335 = vmatprep.subr.bf16.mxu0 0
    %336 = vmatpush1.bf16.msra.mxu0 0
    %337 = vmatprep.subr.bf16.mxu0 0
    %338 = vmatpush1.bf16.msra.mxu0 0
    %339 = vmatprep.subr.bf16.mxu0 0
    %340 = vmatpush1.bf16.msra.mxu0 0
    %341 = vmatprep.subr.bf16.mxu0 0
    %342 = vmatpush1.bf16.msra.mxu0 0
    %343 = vmatprep.subr.bf16.mxu0 0
    %344 = vmatpush1.bf16.msra.mxu0 0
    %345 = vmatprep.subr.bf16.mxu0 0
    %346 = vmatpush1.bf16.msra.mxu0 0
    %347 = vmatprep.subr.bf16.mxu0 0
    %348 = vmatpush1.bf16.msra.mxu0 0
    %349 = vmatprep.subr.bf16.mxu0 0
    %350 = vmatpush1.bf16.msra.mxu0 0
    %351 = vmatprep.mubr.bf16.mxu0 0
    %352 = vmatmul.mubr.bf16.gmra.mrb[0].mxu0 %v286
    %v353 = vpop.f32.mrb[0].mxu0
    %v354 = vadd.f32 %v249, %v353
    %v355 = vpop.f32.mrb[0].mxu0
    %v356 = vadd.f32 %v249, %v355
    %v357 = vpop.f32.mrb[0].mxu0
    %v358 = vadd.f32 %v254, %v357
    %v359 = vpop.f32.mrb[0].mxu0
    %v360 = vadd.f32 %v254, %v359
    %361 = vmatprep.mubr.bf16.mxu0 0
    %362 = vmatmul.mubr.bf16.gmra.mrb[0].mxu0 %v289
    %v363 = vpop.f32.mrb[0].mxu0
    %v364 = vadd.f32 %v259, %v363
    %v365 = vpop.f32.mrb[0].mxu0
    %v366 = vadd.f32 %v259, %v365
    %v367 = vpop.f32.mrb[0].mxu0
    %v368 = vadd.f32 %v264, %v367
    %v369 = vpop.f32.mrb[0].mxu0
    %v370 = vadd.f32 %v264, %v369
    %371 = vmatprep.mubr.bf16.mxu0 0
    %372 = vmatmul.mubr.bf16.gmra.mrb[0].mxu0 %v292
    %v373 = vpop.f32.mrb[0].mxu0
    %v374 = vadd.f32 %v269, %v373
    %v375 = vpop.f32.mrb[0].mxu0
    %v376 = vadd.f32 %v269, %v375
    %v377 = vpop.f32.mrb[0].mxu0
    %v378 = vpop.f32.mrb[0].mxu0
    %379 = vdwg.mxu0
    %380 = vmatprep.subr.bf16.mxu0 %v220
    %381 = vmatpush1.bf16.msra.mxu0 %v219
    %382 = vmatprep.subr.bf16.mxu0 %v228
    %383 = vmatpush1.bf16.msra.mxu0 %v227
    %384 = vmatprep.subr.bf16.mxu0 %v305
    %385 = vmatpush1.bf16.msra.mxu0 %v302
    %386 = vmatprep.subr.bf16.mxu0 0
    %387 = vmatpush1.bf16.msra.mxu0 0
    %388 = vmatprep.subr.bf16.mxu0 0
    %389 = vmatpush1.bf16.msra.mxu0 0
    %390 = vmatprep.subr.bf16.mxu0 0
    %391 = vmatpush1.bf16.msra.mxu0 0
    %392 = vmatprep.subr.bf16.mxu0 0
    %393 = vmatpush1.bf16.msra.mxu0 0
    %394 = vmatprep.subr.bf16.mxu0 0
    %395 = vmatpush1.bf16.msra.mxu0 0
    %396 = vmatprep.subr.bf16.mxu0 0
    %397 = vmatpush1.bf16.msra.mxu0 0
    %398 = vmatprep.subr.bf16.mxu0 0
    %399 = vmatpush1.bf16.msra.mxu0 0
    %400 = vmatprep.subr.bf16.mxu0 0
    %401 = vmatpush1.bf16.msra.mxu0 0
    %402 = vmatprep.subr.bf16.mxu0 0
    %403 = vmatpush1.bf16.msra.mxu0 0
    %404 = vmatprep.subr.bf16.mxu0 0
    %405 = vmatpush1.bf16.msra.mxu0 0
    %406 = vmatprep.subr.bf16.mxu0 0
    %407 = vmatpush1.bf16.msra.mxu0 0
    %408 = vmatprep.subr.bf16.mxu0 0
    %409 = vmatpush1.bf16.msra.mxu0 0
    %410 = vmatprep.subr.bf16.mxu0 0
    %411 = vmatpush1.bf16.msra.mxu0 0
    %412 = vmatprep.mubr.bf16.mxu0 0
    %413 = vmatmul.mubr.bf16.gmra.mrb[0].mxu0 %v286
    %v414 = vpop.f32.mrb[0].mxu0
    %v415 = vadd.f32 %v249, %v414
    %v416 = vpop.f32.mrb[0].mxu0
    %v417 = vadd.f32 %v249, %v416
    %v418 = vpop.f32.mrb[0].mxu0
    %v419 = vadd.f32 %v254, %v418
    %v420 = vpop.f32.mrb[0].mxu0
    %v421 = vadd.f32 %v254, %v420
    %422 = vmatprep.mubr.bf16.mxu0 0
    %423 = vmatmul.mubr.bf16.gmra.mrb[0].mxu0 %v289
    %v424 = vpop.f32.mrb[0].mxu0
    %v425 = vadd.f32 %v259, %v424
    %v426 = vpop.f32.mrb[0].mxu0
    %v427 = vadd.f32 %v259, %v426
    %v428 = vpop.f32.mrb[0].mxu0
    %v429 = vadd.f32 %v264, %v428
    %v430 = vpop.f32.mrb[0].mxu0
    %v431 = vadd.f32 %v264, %v430
    %432 = vmatprep.mubr.bf16.mxu0 0
    %433 = vmatmul.mubr.bf16.gmra.mrb[0].mxu0 %v292
    %v434 = vpop.f32.mrb[0].mxu0
    %v435 = vadd.f32 %v269, %v434
    %v436 = vpop.f32.mrb[0].mxu0
    %v437 = vadd.f32 %v269, %v436
    %v438 = vpop.f32.mrb[0].mxu0
    %v439 = vpop.f32.mrb[0].mxu0
    %440 = vdwg.mxu0
    %441 = vmatprep.subr.bf16.mxu0 %v222
    %442 = vmatpush1.bf16.msra.mxu0 %v221
    %443 = vmatprep.subr.bf16.mxu0 %v230
    %444 = vmatpush1.bf16.msra.mxu0 %v229
    %445 = vmatprep.subr.bf16.mxu0 %v311
    %446 = vmatpush1.bf16.msra.mxu0 %v308
    %447 = vmatprep.subr.bf16.mxu0 0
    %448 = vmatpush1.bf16.msra.mxu0 0
    %449 = vmatprep.subr.bf16.mxu0 0
    %450 = vmatpush1.bf16.msra.mxu0 0
    %451 = vmatprep.subr.bf16.mxu0 0
    %452 = vmatpush1.bf16.msra.mxu0 0
    %453 = vmatprep.subr.bf16.mxu0 0
    %454 = vmatpush1.bf16.msra.mxu0 0
    %455 = vmatprep.subr.bf16.mxu0 0
    %456 = vmatpush1.bf16.msra.mxu0 0
    %457 = vmatprep.subr.bf16.mxu0 0
    %458 = vmatpush1.bf16.msra.mxu0 0
    %459 = vmatprep.subr.bf16.mxu0 0
    %460 = vmatpush1.bf16.msra.mxu0 0
    %461 = vmatprep.subr.bf16.mxu0 0
    %462 = vmatpush1.bf16.msra.mxu0 0
    %463 = vmatprep.subr.bf16.mxu0 0
    %464 = vmatpush1.bf16.msra.mxu0 0
    %465 = vmatprep.subr.bf16.mxu0 0
    %466 = vmatpush1.bf16.msra.mxu0 0
    %467 = vmatprep.subr.bf16.mxu0 0
    %468 = vmatpush1.bf16.msra.mxu0 0
    %469 = vmatprep.subr.bf16.mxu0 0
    %470 = vmatpush1.bf16.msra.mxu0 0
    %471 = vmatprep.subr.bf16.mxu0 0
    %472 = vmatpush1.bf16.msra.mxu0 0
    %473 = vmatprep.mubr.bf16.mxu0 0
    %474 = vmatmul.mubr.bf16.gmra.mrb[0].mxu0 %v286
    %v475 = vpop.f32.mrb[0].mxu0
    %v476 = vadd.f32 %v249, %v475
    %v477 = vpop.f32.mrb[0].mxu0
    %v478 = vadd.f32 %v249, %v477
    %v479 = vpop.f32.mrb[0].mxu0
    %v480 = vadd.f32 %v254, %v479
    %v481 = vpop.f32.mrb[0].mxu0
    %v482 = vadd.f32 %v254, %v481
    %483 = vmatprep.mubr.bf16.mxu0 0
    %484 = vmatmul.mubr.bf16.gmra.mrb[0].mxu0 %v289
    %v485 = vpop.f32.mrb[0].mxu0
    %v486 = vadd.f32 %v259, %v485
    %v487 = vpop.f32.mrb[0].mxu0
    %v488 = vadd.f32 %v259, %v487
    %v489 = vpop.f32.mrb[0].mxu0
    %v490 = vadd.f32 %v264, %v489
    %v491 = vpop.f32.mrb[0].mxu0
    %v492 = vadd.f32 %v264, %v491
    %493 = vmatprep.mubr.bf16.mxu0 0
    %494 = vmatmul.mubr.bf16.gmra.mrb[0].mxu0 %v292
    %v495 = vpop.f32.mrb[0].mxu0
    %v496 = vadd.f32 %v269, %v495
    %v497 = vpop.f32.mrb[0].mxu0
    %v498 = vadd.f32 %v269, %v497
    %v499 = vpop.f32.mrb[0].mxu0
    %v500 = vpop.f32.mrb[0].mxu0
    %501 = vdwg.mxu0
    %502 = vmatprep.subr.bf16.mxu0 %v224
    %503 = vmatpush1.bf16.msra.mxu0 %v223
    %504 = vmatprep.subr.bf16.mxu0 %v232
    %505 = vmatpush1.bf16.msra.mxu0 %v231
    %506 = vmatprep.subr.bf16.mxu0 %v317
    %507 = vmatpush1.bf16.msra.mxu0 %v314
    %508 = vmatprep.subr.bf16.mxu0 0
    %509 = vmatpush1.bf16.msra.mxu0 0
    %510 = vmatprep.subr.bf16.mxu0 0
    %511 = vmatpush1.bf16.msra.mxu0 0
    %512 = vmatprep.subr.bf16.mxu0 0
    %513 = vmatpush1.bf16.msra.mxu0 0
    %514 = vmatprep.subr.bf16.mxu0 0
    %515 = vmatpush1.bf16.msra.mxu0 0
    %516 = vmatprep.subr.bf16.mxu0 0
    %517 = vmatpush1.bf16.msra.mxu0 0
    %518 = vmatprep.subr.bf16.mxu0 0
    %519 = vmatpush1.bf16.msra.mxu0 0
    %520 = vmatprep.subr.bf16.mxu0 0
    %521 = vmatpush1.bf16.msra.mxu0 0
    %522 = vmatprep.subr.bf16.mxu0 0
    %523 = vmatpush1.bf16.msra.mxu0 0
    %524 = vmatprep.subr.bf16.mxu0 0
    %525 = vmatpush1.bf16.msra.mxu0 0
    %526 = vmatprep.subr.bf16.mxu0 0
    %527 = vmatpush1.bf16.msra.mxu0 0
    %528 = vmatprep.subr.bf16.mxu0 0
    %529 = vmatpush1.bf16.msra.mxu0 0
    %530 = vmatprep.subr.bf16.mxu0 0
    %531 = vmatpush1.bf16.msra.mxu0 0
    %532 = vmatprep.subr.bf16.mxu0 0
    %533 = vmatpush1.bf16.msra.mxu0 0
    %534 = vmatprep.mubr.bf16.mxu0 0
    %535 = vmatmul.mubr.bf16.gmra.mrb[0].mxu0 %v286
    %v536 = vpop.f32.mrb[0].mxu0
    %v537 = vadd.f32 %v249, %v536
    %v538 = vpop.f32.mrb[0].mxu0
    %v539 = vadd.f32 %v249, %v538
    %v540 = vpop.f32.mrb[0].mxu0
    %v541 = vadd.f32 %v254, %v540
    %v542 = vpop.f32.mrb[0].mxu0
    %v543 = vadd.f32 %v254, %v542
    %544 = vmatprep.mubr.bf16.mxu0 0
    %545 = vmatmul.mubr.bf16.gmra.mrb[0].mxu0 %v289
    %v546 = vpop.f32.mrb[0].mxu0
    %v547 = vadd.f32 %v259, %v546
    %v548 = vpop.f32.mrb[0].mxu0
    %v549 = vadd.f32 %v259, %v548
    %v550 = vpop.f32.mrb[0].mxu0
    %v551 = vadd.f32 %v264, %v550
    %v552 = vpop.f32.mrb[0].mxu0
    %v553 = vadd.f32 %v264, %v552
    %554 = vmatprep.mubr.bf16.mxu0 0
    %555 = vmatmul.mubr.bf16.gmra.mrb[0].mxu0 %v292
    %v556 = vpop.f32.mrb[0].mxu0
    %v557 = vadd.f32 %v269, %v556
    %v558 = vpop.f32.mrb[0].mxu0
    %v559 = vadd.f32 %v269, %v558
    %v560 = vpop.f32.mrb[0].mxu0
    %v561 = vpop.f32.mrb[0].mxu0
    %562 = vdwg.mxu0
    %v563 = vmax.f32 %v354, 0.0
    %v564 = vmax.f32 %v356, 0.0
    %v565 = vmax.f32 %v415, 0.0
    %v566 = vmax.f32 %v417, 0.0
    %v567 = vmax.f32 %v476, 0.0
    %v568 = vmax.f32 %v478, 0.0
    %v569 = vmax.f32 %v537, 0.0
    %v570 = vmax.f32 %v539, 0.0
    %v571 = vmax.f32 %v358, 0.0
    %v572 = vmax.f32 %v360, 0.0
    %v573 = vmax.f32 %v419, 0.0
    %v574 = vmax.f32 %v421, 0.0
    %v575 = vmax.f32 %v480, 0.0
    %v576 = vmax.f32 %v482, 0.0
    %v577 = vmax.f32 %v541, 0.0
    %v578 = vmax.f32 %v543, 0.0
    %v579 = vmax.f32 %v364, 0.0
    %v580 = vmax.f32 %v366, 0.0
    %v581 = vmax.f32 %v425, 0.0
    %v582 = vmax.f32 %v427, 0.0
    %v583 = vmax.f32 %v486, 0.0
    %v584 = vmax.f32 %v488, 0.0
    %v585 = vmax.f32 %v547, 0.0
    %v586 = vmax.f32 %v549, 0.0
    %v587 = vmax.f32 %v368, 0.0
    %v588 = vmax.f32 %v370, 0.0
    %v589 = vmax.f32 %v429, 0.0
    %v590 = vmax.f32 %v431, 0.0
    %v591 = vmax.f32 %v490, 0.0
    %v592 = vmax.f32 %v492, 0.0
    %v593 = vmax.f32 %v551, 0.0
    %v594 = vmax.f32 %v553, 0.0
    %v595 = vmax.f32 %v374, 0.0
    %v596 = vmax.f32 %v376, 0.0
    %v597 = vmax.f32 %v435, 0.0
    %v598 = vmax.f32 %v437, 0.0
    %v599 = vmax.f32 %v496, 0.0
    %v600 = vmax.f32 %v498, 0.0
    %v601 = vmax.f32 %v557, 0.0
    %v602 = vmax.f32 %v559, 0.0
    %v603 = vmul.f32 %v563, %v563
    %v604 = vmul.f32 %v564, %v564
    %v605 = vmul.f32 %v565, %v565
    %v606 = vmul.f32 %v566, %v566
    %v607 = vmul.f32 %v567, %v567
    %v608 = vmul.f32 %v568, %v568
    %v609 = vmul.f32 %v569, %v569
    %v610 = vmul.f32 %v570, %v570
    %v611 = vmul.f32 %v571, %v571
    %v612 = vmul.f32 %v572, %v572
    %v613 = vmul.f32 %v573, %v573
    %v614 = vmul.f32 %v574, %v574
    %v615 = vmul.f32 %v575, %v575
    %v616 = vmul.f32 %v576, %v576
    %v617 = vmul.f32 %v577, %v577
    %v618 = vmul.f32 %v578, %v578
    %v619 = vmul.f32 %v579, %v579
    %v620 = vmul.f32 %v580, %v580
    %v621 = vmul.f32 %v581, %v581
    %v622 = vmul.f32 %v582, %v582
    %v623 = vmul.f32 %v583, %v583
    %v624 = vmul.f32 %v584, %v584
    %v625 = vmul.f32 %v585, %v585
    %v626 = vmul.f32 %v586, %v586
    %v627 = vmul.f32 %v587, %v587
    %v628 = vmul.f32 %v588, %v588
    %v629 = vmul.f32 %v589, %v589
    %v630 = vmul.f32 %v590, %v590
    %v631 = vmul.f32 %v591, %v591
    %v632 = vmul.f32 %v592, %v592
    %v633 = vmul.f32 %v593, %v593
    %v634 = vmul.f32 %v594, %v594
    %v635 = vmul.f32 %v595, %v595
    %v636 = vmul.f32 %v596, %v596
    %v637 = vmul.f32 %v597, %v597
    %v638 = vmul.f32 %v598, %v598
    %v639 = vmul.f32 %v599, %v599
    %v640 = vmul.f32 %v600, %v600
    %v641 = vmul.f32 %v601, %v601
    %v642 = vmul.f32 %v602, %v602
    %v643 = vmul.f32 %v603, %v563
    %v644 = vmul.f32 %v604, %v564
    %v645 = vmul.f32 %v605, %v565
    %v646 = vmul.f32 %v606, %v566
    %v647 = vmul.f32 %v607, %v567
    %v648 = vmul.f32 %v608, %v568
    %v649 = vmul.f32 %v609, %v569
    %v650 = vmul.f32 %v610, %v570
    %v651 = vmul.f32 %v611, %v571
    %v652 = vmul.f32 %v612, %v572
    %v653 = vmul.f32 %v613, %v573
    %v654 = vmul.f32 %v614, %v574
    %v655 = vmul.f32 %v615, %v575
    %v656 = vmul.f32 %v616, %v576
    %v657 = vmul.f32 %v617, %v577
    %v658 = vmul.f32 %v618, %v578
    %v659 = vmul.f32 %v619, %v579
    %v660 = vmul.f32 %v620, %v580
    %v661 = vmul.f32 %v621, %v581
    %v662 = vmul.f32 %v622, %v582
    %v663 = vmul.f32 %v623, %v583
    %v664 = vmul.f32 %v624, %v584
    %v665 = vmul.f32 %v625, %v585
    %v666 = vmul.f32 %v626, %v586
    %v667 = vmul.f32 %v627, %v587
    %v668 = vmul.f32 %v628, %v588
    %v669 = vmul.f32 %v629, %v589
    %v670 = vmul.f32 %v630, %v590
    %v671 = vmul.f32 %v631, %v591
    %v672 = vmul.f32 %v632, %v592
    %v673 = vmul.f32 %v633, %v593
    %v674 = vmul.f32 %v634, %v594
    %v675 = vmul.f32 %v635, %v595
    %v676 = vmul.f32 %v636, %v596
    %v677 = vmul.f32 %v637, %v597
    %v678 = vmul.f32 %v638, %v598
    %v679 = vmul.f32 %v639, %v599
    %v680 = vmul.f32 %v640, %v600
    %v681 = vmul.f32 %v641, %v601
    %v682 = vmul.f32 %v642, %v602
    %s683 = scalar_lea.vmem %s3, 20
    %v684 = vld [vmem:[%s683] sm:$0xf]
    %v685 = vld [vmem:[%s683 + $0x4] sm:$0xf]
    %v686 = vld [vmem:[%s683 + $0x8] sm:$0xf]
    %v687 = vld [vmem:[%s683 + $0xc] sm:$0xf]
    %v688 = vld [vmem:[%s683 + $0x10] sm:$0xf]
    %v689 = vpack.c.bf16 %v651, %v643
    %v690 = vpack.c.bf16 %v652, %v644
    %v691 = vpack.c.bf16 %v653, %v645
    %v692 = vpack.c.bf16 %v654, %v646
    %v693 = vpack.c.bf16 %v655, %v647
    %v694 = vpack.c.bf16 %v656, %v648
    %v695 = vpack.c.bf16 %v657, %v649
    %v696 = vpack.c.bf16 %v658, %v650
    %v697 = vpack.c.bf16 %v667, %v659
    %v698 = vpack.c.bf16 %v668, %v660
    %v699 = vpack.c.bf16 %v669, %v661
    %v700 = vpack.c.bf16 %v670, %v662
    %v701 = vpack.c.bf16 %v671, %v663
    %v702 = vpack.c.bf16 %v672, %v664
    %v703 = vpack.c.bf16 %v673, %v665
    %v704 = vpack.c.bf16 %v674, %v666
    %v705 = vpack.c.bf16 %v675, %v675
    %v706 = vpack.c.bf16 %v676, %v676
    %v707 = vpack.c.bf16 %v677, %v677
    %v708 = vpack.c.bf16 %v678, %v678
    %v709 = vpack.c.bf16 %v679, %v679
    %v710 = vpack.c.bf16 %v680, %v680
    %v711 = vpack.c.bf16 %v681, %v681
    %v712 = vpack.c.bf16 %v682, %v682
    %s713 = scalar_lea.vmem %s4, 40
    %v714 = vld [vmem:[%s713] sm:$0xff]
    %v715 = vld [vmem:[%s713 + $0x8] sm:$0xff]
    %v716 = vld [vmem:[%s713 + $0x10] sm:$0xff]
    %v717 = vld [vmem:[%s713 + $0x18] sm:$0xff]
    %v718 = vld [vmem:[%s713 + $0x20] sm:$0xff]
    %720 = vset.pattern.permute.xlu0 0
    %721 = vperm.xlu0 %720, %v714
    %v722 = vpop.permute.xlu0 %721
    %725 = vset.pattern.permute.xlu0 0
    %726 = vperm.xlu0 %725, %v715
    %v727 = vpop.permute.xlu0 %726
    %730 = vset.pattern.permute.xlu0 0
    %731 = vperm.xlu0 %730, %v716
    %v732 = vpop.permute.xlu0 %731
    %735 = vset.pattern.permute.xlu0 0
    %736 = vperm.xlu0 %735, %v717
    %v737 = vpop.permute.xlu0 %736
    %740 = vset.pattern.permute.xlu0 0
    %741 = vperm.xlu0 %740, %v718
    %v742 = vpop.permute.xlu0 %741
    %v749 = vunpack.c.l.b16 %v684
    %v750 = vunpack.c.l.b16 %v685
    %v751 = vunpack.c.l.b16 %v686
    %v752 = vunpack.c.l.b16 %v687
    %v753 = vunpack.c.l.b16 %v688
    %v754 = vpack.c.b16 %v750, %v749
    %v755 = vpack.c.b16 %v752, %v751
    %v756 = vpack.c.b16 %v753, %v753
    %v758 = vsel %vm284, %v754, 0
    %v761 = vsel %vm284, %v755, 0
    %v764 = vsel %vm284, %v756, 0
    %v767 = vsel %vm294, %v705, 0
    %v770 = vsel %vm294, %v706, 0
    %v773 = vsel %vm294, %v707, 0
    %v776 = vsel %vm294, %v708, 0
    %v779 = vsel %vm294, %v709, 0
    %v782 = vsel %vm294, %v710, 0
    %v785 = vsel %vm294, %v711, 0
    %v788 = vsel %vm294, %v712, 0
    %790 = vmatprep.subr.bf16.mxu0 %v690
    %791 = vmatpush1.bf16.msra.mxu0 %v689
    %792 = vmatprep.subr.bf16.mxu0 %v698
    %793 = vmatpush1.bf16.msra.mxu0 %v697
    %794 = vmatprep.subr.bf16.mxu0 %v770
    %795 = vmatpush1.bf16.msra.mxu0 %v767
    %796 = vmatprep.subr.bf16.mxu0 0
    %797 = vmatpush1.bf16.msra.mxu0 0
    %798 = vmatprep.subr.bf16.mxu0 0
    %799 = vmatpush1.bf16.msra.mxu0 0
    %800 = vmatprep.subr.bf16.mxu0 0
    %801 = vmatpush1.bf16.msra.mxu0 0
    %802 = vmatprep.subr.bf16.mxu0 0
    %803 = vmatpush1.bf16.msra.mxu0 0
    %804 = vmatprep.subr.bf16.mxu0 0
    %805 = vmatpush1.bf16.msra.mxu0 0
    %806 = vmatprep.subr.bf16.mxu0 0
    %807 = vmatpush1.bf16.msra.mxu0 0
    %808 = vmatprep.subr.bf16.mxu0 0
    %809 = vmatpush1.bf16.msra.mxu0 0
    %810 = vmatprep.subr.bf16.mxu0 0
    %811 = vmatpush1.bf16.msra.mxu0 0
    %812 = vmatprep.subr.bf16.mxu0 0
    %813 = vmatpush1.bf16.msra.mxu0 0
    %814 = vmatprep.subr.bf16.mxu0 0
    %815 = vmatpush1.bf16.msra.mxu0 0
    %816 = vmatprep.subr.bf16.mxu0 0
    %817 = vmatpush1.bf16.msra.mxu0 0
    %818 = vmatprep.subr.bf16.mxu0 0
    %819 = vmatpush1.bf16.msra.mxu0 0
    %820 = vmatprep.subr.bf16.mxu0 0
    %821 = vmatpush1.bf16.msra.mxu0 0
    %822 = vmatprep.mubr.bf16.mxu0 0
    %823 = vmatmul.mubr.bf16.gmra.mrb[0].mxu0 %v758
    %v824 = vpop.f32.mrb[0].mxu0
    %v825 = vadd.f32 %v722, %v824
    %v826 = vpop.f32.mrb[0].mxu0
    %v827 = vadd.f32 %v722, %v826
    %v828 = vpop.f32.mrb[0].mxu0
    %v829 = vadd.f32 %v727, %v828
    %v830 = vpop.f32.mrb[0].mxu0
    %v831 = vadd.f32 %v727, %v830
    %832 = vmatprep.mubr.bf16.mxu0 0
    %833 = vmatmul.mubr.bf16.gmra.mrb[0].mxu0 %v761
    %v834 = vpop.f32.mrb[0].mxu0
    %v835 = vadd.f32 %v732, %v834
    %v836 = vpop.f32.mrb[0].mxu0
    %v837 = vadd.f32 %v732, %v836
    %v838 = vpop.f32.mrb[0].mxu0
    %v839 = vadd.f32 %v737, %v838
    %v840 = vpop.f32.mrb[0].mxu0
    %v841 = vadd.f32 %v737, %v840
    %842 = vmatprep.mubr.bf16.mxu0 0
    %843 = vmatmul.mubr.bf16.gmra.mrb[0].mxu0 %v764
    %v844 = vpop.f32.mrb[0].mxu0
    %v845 = vadd.f32 %v742, %v844
    %v846 = vpop.f32.mrb[0].mxu0
    %v847 = vadd.f32 %v742, %v846
    %v848 = vpop.f32.mrb[0].mxu0
    %v849 = vpop.f32.mrb[0].mxu0
    %850 = vdwg.mxu0
    %851 = vmatprep.subr.bf16.mxu0 %v692
    %852 = vmatpush1.bf16.msra.mxu0 %v691
    %853 = vmatprep.subr.bf16.mxu0 %v700
    %854 = vmatpush1.bf16.msra.mxu0 %v699
    %855 = vmatprep.subr.bf16.mxu0 %v776
    %856 = vmatpush1.bf16.msra.mxu0 %v773
    %857 = vmatprep.subr.bf16.mxu0 0
    %858 = vmatpush1.bf16.msra.mxu0 0
    %859 = vmatprep.subr.bf16.mxu0 0
    %860 = vmatpush1.bf16.msra.mxu0 0
    %861 = vmatprep.subr.bf16.mxu0 0
    %862 = vmatpush1.bf16.msra.mxu0 0
    %863 = vmatprep.subr.bf16.mxu0 0
    %864 = vmatpush1.bf16.msra.mxu0 0
    %865 = vmatprep.subr.bf16.mxu0 0
    %866 = vmatpush1.bf16.msra.mxu0 0
    %867 = vmatprep.subr.bf16.mxu0 0
    %868 = vmatpush1.bf16.msra.mxu0 0
    %869 = vmatprep.subr.bf16.mxu0 0
    %870 = vmatpush1.bf16.msra.mxu0 0
    %871 = vmatprep.subr.bf16.mxu0 0
    %872 = vmatpush1.bf16.msra.mxu0 0
    %873 = vmatprep.subr.bf16.mxu0 0
    %874 = vmatpush1.bf16.msra.mxu0 0
    %875 = vmatprep.subr.bf16.mxu0 0
    %876 = vmatpush1.bf16.msra.mxu0 0
    %877 = vmatprep.subr.bf16.mxu0 0
    %878 = vmatpush1.bf16.msra.mxu0 0
    %879 = vmatprep.subr.bf16.mxu0 0
    %880 = vmatpush1.bf16.msra.mxu0 0
    %881 = vmatprep.subr.bf16.mxu0 0
    %882 = vmatpush1.bf16.msra.mxu0 0
    %883 = vmatprep.mubr.bf16.mxu0 0
    %884 = vmatmul.mubr.bf16.gmra.mrb[0].mxu0 %v758
    %v885 = vpop.f32.mrb[0].mxu0
    %v886 = vadd.f32 %v722, %v885
    %v887 = vpop.f32.mrb[0].mxu0
    %v888 = vadd.f32 %v722, %v887
    %v889 = vpop.f32.mrb[0].mxu0
    %v890 = vadd.f32 %v727, %v889
    %v891 = vpop.f32.mrb[0].mxu0
    %v892 = vadd.f32 %v727, %v891
    %893 = vmatprep.mubr.bf16.mxu0 0
    %894 = vmatmul.mubr.bf16.gmra.mrb[0].mxu0 %v761
    %v895 = vpop.f32.mrb[0].mxu0
    %v896 = vadd.f32 %v732, %v895
    %v897 = vpop.f32.mrb[0].mxu0
    %v898 = vadd.f32 %v732, %v897
    %v899 = vpop.f32.mrb[0].mxu0
    %v900 = vadd.f32 %v737, %v899
    %v901 = vpop.f32.mrb[0].mxu0
    %v902 = vadd.f32 %v737, %v901
    %903 = vmatprep.mubr.bf16.mxu0 0
    %904 = vmatmul.mubr.bf16.gmra.mrb[0].mxu0 %v764
    %v905 = vpop.f32.mrb[0].mxu0
    %v906 = vadd.f32 %v742, %v905
    %v907 = vpop.f32.mrb[0].mxu0
    %v908 = vadd.f32 %v742, %v907
    %v909 = vpop.f32.mrb[0].mxu0
    %v910 = vpop.f32.mrb[0].mxu0
    %911 = vdwg.mxu0
    %912 = vmatprep.subr.bf16.mxu0 %v694
    %913 = vmatpush1.bf16.msra.mxu0 %v693
    %914 = vmatprep.subr.bf16.mxu0 %v702
    %915 = vmatpush1.bf16.msra.mxu0 %v701
    %916 = vmatprep.subr.bf16.mxu0 %v782
    %917 = vmatpush1.bf16.msra.mxu0 %v779
    %918 = vmatprep.subr.bf16.mxu0 0
    %919 = vmatpush1.bf16.msra.mxu0 0
    %920 = vmatprep.subr.bf16.mxu0 0
    %921 = vmatpush1.bf16.msra.mxu0 0
    %922 = vmatprep.subr.bf16.mxu0 0
    %923 = vmatpush1.bf16.msra.mxu0 0
    %924 = vmatprep.subr.bf16.mxu0 0
    %925 = vmatpush1.bf16.msra.mxu0 0
    %926 = vmatprep.subr.bf16.mxu0 0
    %927 = vmatpush1.bf16.msra.mxu0 0
    %928 = vmatprep.subr.bf16.mxu0 0
    %929 = vmatpush1.bf16.msra.mxu0 0
    %930 = vmatprep.subr.bf16.mxu0 0
    %931 = vmatpush1.bf16.msra.mxu0 0
    %932 = vmatprep.subr.bf16.mxu0 0
    %933 = vmatpush1.bf16.msra.mxu0 0
    %934 = vmatprep.subr.bf16.mxu0 0
    %935 = vmatpush1.bf16.msra.mxu0 0
    %936 = vmatprep.subr.bf16.mxu0 0
    %937 = vmatpush1.bf16.msra.mxu0 0
    %938 = vmatprep.subr.bf16.mxu0 0
    %939 = vmatpush1.bf16.msra.mxu0 0
    %940 = vmatprep.subr.bf16.mxu0 0
    %941 = vmatpush1.bf16.msra.mxu0 0
    %942 = vmatprep.subr.bf16.mxu0 0
    %943 = vmatpush1.bf16.msra.mxu0 0
    %944 = vmatprep.mubr.bf16.mxu0 0
    %945 = vmatmul.mubr.bf16.gmra.mrb[0].mxu0 %v758
    %v946 = vpop.f32.mrb[0].mxu0
    %v947 = vadd.f32 %v722, %v946
    %v948 = vpop.f32.mrb[0].mxu0
    %v949 = vadd.f32 %v722, %v948
    %v950 = vpop.f32.mrb[0].mxu0
    %v951 = vadd.f32 %v727, %v950
    %v952 = vpop.f32.mrb[0].mxu0
    %v953 = vadd.f32 %v727, %v952
    %954 = vmatprep.mubr.bf16.mxu0 0
    %955 = vmatmul.mubr.bf16.gmra.mrb[0].mxu0 %v761
    %v956 = vpop.f32.mrb[0].mxu0
    %v957 = vadd.f32 %v732, %v956
    %v958 = vpop.f32.mrb[0].mxu0
    %v959 = vadd.f32 %v732, %v958
    %v960 = vpop.f32.mrb[0].mxu0
    %v961 = vadd.f32 %v737, %v960
    %v962 = vpop.f32.mrb[0].mxu0
    %v963 = vadd.f32 %v737, %v962
    %964 = vmatprep.mubr.bf16.mxu0 0
    %965 = vmatmul.mubr.bf16.gmra.mrb[0].mxu0 %v764
    %v966 = vpop.f32.mrb[0].mxu0
    %v967 = vadd.f32 %v742, %v966
    %v968 = vpop.f32.mrb[0].mxu0
    %v969 = vadd.f32 %v742, %v968
    %v970 = vpop.f32.mrb[0].mxu0
    %v971 = vpop.f32.mrb[0].mxu0
    %972 = vdwg.mxu0
    %973 = vmatprep.subr.bf16.mxu0 %v696
    %974 = vmatpush1.bf16.msra.mxu0 %v695
    %975 = vmatprep.subr.bf16.mxu0 %v704
    %976 = vmatpush1.bf16.msra.mxu0 %v703
    %977 = vmatprep.subr.bf16.mxu0 %v788
    %978 = vmatpush1.bf16.msra.mxu0 %v785
    %979 = vmatprep.subr.bf16.mxu0 0
    %980 = vmatpush1.bf16.msra.mxu0 0
    %981 = vmatprep.subr.bf16.mxu0 0
    %982 = vmatpush1.bf16.msra.mxu0 0
    %983 = vmatprep.subr.bf16.mxu0 0
    %984 = vmatpush1.bf16.msra.mxu0 0
    %985 = vmatprep.subr.bf16.mxu0 0
    %986 = vmatpush1.bf16.msra.mxu0 0
    %987 = vmatprep.subr.bf16.mxu0 0
    %988 = vmatpush1.bf16.msra.mxu0 0
    %989 = vmatprep.subr.bf16.mxu0 0
    %990 = vmatpush1.bf16.msra.mxu0 0
    %991 = vmatprep.subr.bf16.mxu0 0
    %992 = vmatpush1.bf16.msra.mxu0 0
    %993 = vmatprep.subr.bf16.mxu0 0
    %994 = vmatpush1.bf16.msra.mxu0 0
    %995 = vmatprep.subr.bf16.mxu0 0
    %996 = vmatpush1.bf16.msra.mxu0 0
    %997 = vmatprep.subr.bf16.mxu0 0
    %998 = vmatpush1.bf16.msra.mxu0 0
    %999 = vmatprep.subr.bf16.mxu0 0
    %1000 = vmatpush1.bf16.msra.mxu0 0
    %1001 = vmatprep.subr.bf16.mxu0 0
    %1002 = vmatpush1.bf16.msra.mxu0 0
    %1003 = vmatprep.subr.bf16.mxu0 0
    %1004 = vmatpush1.bf16.msra.mxu0 0
    %1005 = vmatprep.mubr.bf16.mxu0 0
    %1006 = vmatmul.mubr.bf16.gmra.mrb[0].mxu0 %v758
    %v1007 = vpop.f32.mrb[0].mxu0
    %v1008 = vadd.f32 %v722, %v1007
    %v1009 = vpop.f32.mrb[0].mxu0
    %v1010 = vadd.f32 %v722, %v1009
    %v1011 = vpop.f32.mrb[0].mxu0
    %v1012 = vadd.f32 %v727, %v1011
    %v1013 = vpop.f32.mrb[0].mxu0
    %v1014 = vadd.f32 %v727, %v1013
    %1015 = vmatprep.mubr.bf16.mxu0 0
    %1016 = vmatmul.mubr.bf16.gmra.mrb[0].mxu0 %v761
    %v1017 = vpop.f32.mrb[0].mxu0
    %v1018 = vadd.f32 %v732, %v1017
    %v1019 = vpop.f32.mrb[0].mxu0
    %v1020 = vadd.f32 %v732, %v1019
    %v1021 = vpop.f32.mrb[0].mxu0
    %v1022 = vadd.f32 %v737, %v1021
    %v1023 = vpop.f32.mrb[0].mxu0
    %v1024 = vadd.f32 %v737, %v1023
    %1025 = vmatprep.mubr.bf16.mxu0 0
    %1026 = vmatmul.mubr.bf16.gmra.mrb[0].mxu0 %v764
    %v1027 = vpop.f32.mrb[0].mxu0
    %v1028 = vadd.f32 %v742, %v1027
    %v1029 = vpop.f32.mrb[0].mxu0
    %v1030 = vadd.f32 %v742, %v1029
    %v1031 = vpop.f32.mrb[0].mxu0
    %v1032 = vpop.f32.mrb[0].mxu0
    %1033 = vdwg.mxu0
    %v1034 = vmax.f32 %v825, 0.0
    %v1035 = vmax.f32 %v827, 0.0
    %v1036 = vmax.f32 %v886, 0.0
    %v1037 = vmax.f32 %v888, 0.0
    %v1038 = vmax.f32 %v947, 0.0
    %v1039 = vmax.f32 %v949, 0.0
    %v1040 = vmax.f32 %v1008, 0.0
    %v1041 = vmax.f32 %v1010, 0.0
    %v1042 = vmax.f32 %v829, 0.0
    %v1043 = vmax.f32 %v831, 0.0
    %v1044 = vmax.f32 %v890, 0.0
    %v1045 = vmax.f32 %v892, 0.0
    %v1046 = vmax.f32 %v951, 0.0
    %v1047 = vmax.f32 %v953, 0.0
    %v1048 = vmax.f32 %v1012, 0.0
    %v1049 = vmax.f32 %v1014, 0.0
    %v1050 = vmax.f32 %v835, 0.0
    %v1051 = vmax.f32 %v837, 0.0
    %v1052 = vmax.f32 %v896, 0.0
    %v1053 = vmax.f32 %v898, 0.0
    %v1054 = vmax.f32 %v957, 0.0
    %v1055 = vmax.f32 %v959, 0.0
    %v1056 = vmax.f32 %v1018, 0.0
    %v1057 = vmax.f32 %v1020, 0.0
    %v1058 = vmax.f32 %v839, 0.0
    %v1059 = vmax.f32 %v841, 0.0
    %v1060 = vmax.f32 %v900, 0.0
    %v1061 = vmax.f32 %v902, 0.0
    %v1062 = vmax.f32 %v961, 0.0
    %v1063 = vmax.f32 %v963, 0.0
    %v1064 = vmax.f32 %v1022, 0.0
    %v1065 = vmax.f32 %v1024, 0.0
    %v1066 = vmax.f32 %v845, 0.0
    %v1067 = vmax.f32 %v847, 0.0
    %v1068 = vmax.f32 %v906, 0.0
    %v1069 = vmax.f32 %v908, 0.0
    %v1070 = vmax.f32 %v967, 0.0
    %v1071 = vmax.f32 %v969, 0.0
    %v1072 = vmax.f32 %v1028, 0.0
    %v1073 = vmax.f32 %v1030, 0.0
    %v1074 = vmul.f32 %v1034, %v1034
    %v1075 = vmul.f32 %v1035, %v1035
    %v1076 = vmul.f32 %v1036, %v1036
    %v1077 = vmul.f32 %v1037, %v1037
    %v1078 = vmul.f32 %v1038, %v1038
    %v1079 = vmul.f32 %v1039, %v1039
    %v1080 = vmul.f32 %v1040, %v1040
    %v1081 = vmul.f32 %v1041, %v1041
    %v1082 = vmul.f32 %v1042, %v1042
    %v1083 = vmul.f32 %v1043, %v1043
    %v1084 = vmul.f32 %v1044, %v1044
    %v1085 = vmul.f32 %v1045, %v1045
    %v1086 = vmul.f32 %v1046, %v1046
    %v1087 = vmul.f32 %v1047, %v1047
    %v1088 = vmul.f32 %v1048, %v1048
    %v1089 = vmul.f32 %v1049, %v1049
    %v1090 = vmul.f32 %v1050, %v1050
    %v1091 = vmul.f32 %v1051, %v1051
    %v1092 = vmul.f32 %v1052, %v1052
    %v1093 = vmul.f32 %v1053, %v1053
    %v1094 = vmul.f32 %v1054, %v1054
    %v1095 = vmul.f32 %v1055, %v1055
    %v1096 = vmul.f32 %v1056, %v1056
    %v1097 = vmul.f32 %v1057, %v1057
    %v1098 = vmul.f32 %v1058, %v1058
    %v1099 = vmul.f32 %v1059, %v1059
    %v1100 = vmul.f32 %v1060, %v1060
    %v1101 = vmul.f32 %v1061, %v1061
    %v1102 = vmul.f32 %v1062, %v1062
    %v1103 = vmul.f32 %v1063, %v1063
    %v1104 = vmul.f32 %v1064, %v1064
    %v1105 = vmul.f32 %v1065, %v1065
    %v1106 = vmul.f32 %v1066, %v1066
    %v1107 = vmul.f32 %v1067, %v1067
    %v1108 = vmul.f32 %v1068, %v1068
    %v1109 = vmul.f32 %v1069, %v1069
    %v1110 = vmul.f32 %v1070, %v1070
    %v1111 = vmul.f32 %v1071, %v1071
    %v1112 = vmul.f32 %v1072, %v1072
    %v1113 = vmul.f32 %v1073, %v1073
    %v1114 = vmul.f32 %v1074, %v1034
    %v1115 = vmul.f32 %v1075, %v1035
    %v1116 = vmul.f32 %v1076, %v1036
    %v1117 = vmul.f32 %v1077, %v1037
    %v1118 = vmul.f32 %v1078, %v1038
    %v1119 = vmul.f32 %v1079, %v1039
    %v1120 = vmul.f32 %v1080, %v1040
    %v1121 = vmul.f32 %v1081, %v1041
    %v1122 = vmul.f32 %v1082, %v1042
    %v1123 = vmul.f32 %v1083, %v1043
    %v1124 = vmul.f32 %v1084, %v1044
    %v1125 = vmul.f32 %v1085, %v1045
    %v1126 = vmul.f32 %v1086, %v1046
    %v1127 = vmul.f32 %v1087, %v1047
    %v1128 = vmul.f32 %v1088, %v1048
    %v1129 = vmul.f32 %v1089, %v1049
    %v1130 = vmul.f32 %v1090, %v1050
    %v1131 = vmul.f32 %v1091, %v1051
    %v1132 = vmul.f32 %v1092, %v1052
    %v1133 = vmul.f32 %v1093, %v1053
    %v1134 = vmul.f32 %v1094, %v1054
    %v1135 = vmul.f32 %v1095, %v1055
    %v1136 = vmul.f32 %v1096, %v1056
    %v1137 = vmul.f32 %v1097, %v1057
    %v1138 = vmul.f32 %v1098, %v1058
    %v1139 = vmul.f32 %v1099, %v1059
    %v1140 = vmul.f32 %v1100, %v1060
    %v1141 = vmul.f32 %v1101, %v1061
    %v1142 = vmul.f32 %v1102, %v1062
    %v1143 = vmul.f32 %v1103, %v1063
    %v1144 = vmul.f32 %v1104, %v1064
    %v1145 = vmul.f32 %v1105, %v1065
    %v1146 = vmul.f32 %v1106, %v1066
    %v1147 = vmul.f32 %v1107, %v1067
    %v1148 = vmul.f32 %v1108, %v1068
    %v1149 = vmul.f32 %v1109, %v1069
    %v1150 = vmul.f32 %v1110, %v1070
    %v1151 = vmul.f32 %v1111, %v1071
    %v1152 = vmul.f32 %v1112, %v1072
    %v1153 = vmul.f32 %v1113, %v1073
    %v1154 = vadd.f32 %v172, %v1114
    %v1155 = vadd.f32 %v173, %v1115
    %v1156 = vadd.f32 %v174, %v1116
    %v1157 = vadd.f32 %v175, %v1117
    %v1158 = vadd.f32 %v176, %v1118
    %v1159 = vadd.f32 %v177, %v1119
    %v1160 = vadd.f32 %v178, %v1120
    %v1161 = vadd.f32 %v179, %v1121
    %v1162 = vadd.f32 %v180, %v1122
    %v1163 = vadd.f32 %v181, %v1123
    %v1164 = vadd.f32 %v182, %v1124
    %v1165 = vadd.f32 %v183, %v1125
    %v1166 = vadd.f32 %v184, %v1126
    %v1167 = vadd.f32 %v185, %v1127
    %v1168 = vadd.f32 %v186, %v1128
    %v1169 = vadd.f32 %v187, %v1129
    %v1170 = vadd.f32 %v188, %v1130
    %v1171 = vadd.f32 %v189, %v1131
    %v1172 = vadd.f32 %v190, %v1132
    %v1173 = vadd.f32 %v191, %v1133
    %v1174 = vadd.f32 %v192, %v1134
    %v1175 = vadd.f32 %v193, %v1135
    %v1176 = vadd.f32 %v194, %v1136
    %v1177 = vadd.f32 %v195, %v1137
    %v1178 = vadd.f32 %v196, %v1138
    %v1179 = vadd.f32 %v197, %v1139
    %v1180 = vadd.f32 %v198, %v1140
    %v1181 = vadd.f32 %v199, %v1141
    %v1182 = vadd.f32 %v200, %v1142
    %v1183 = vadd.f32 %v201, %v1143
    %v1184 = vadd.f32 %v202, %v1144
    %v1185 = vadd.f32 %v203, %v1145
    %v1186 = vadd.f32 %v204, %v1146
    %v1187 = vadd.f32 %v205, %v1147
    %v1188 = vadd.f32 %v206, %v1148
    %v1189 = vadd.f32 %v207, %v1149
    %v1190 = vadd.f32 %v208, %v1150
    %v1191 = vadd.f32 %v209, %v1151
    %v1192 = vadd.f32 %v210, %v1152
    %v1193 = vadd.f32 %v211, %v1153
    %s1194 = scalar_lea.vmem %s3, 40
    %v1195 = vld [vmem:[%s1194] sm:$0xf]
    %v1196 = vld [vmem:[%s1194 + $0x4] sm:$0xf]
    %v1197 = vld [vmem:[%s1194 + $0x8] sm:$0xf]
    %v1198 = vld [vmem:[%s1194 + $0xc] sm:$0xf]
    %v1199 = vld [vmem:[%s1194 + $0x10] sm:$0xf]
    %v1200 = vpack.c.bf16 %v1162, %v1154
    %v1201 = vpack.c.bf16 %v1163, %v1155
    %v1202 = vpack.c.bf16 %v1164, %v1156
    %v1203 = vpack.c.bf16 %v1165, %v1157
    %v1204 = vpack.c.bf16 %v1166, %v1158
    %v1205 = vpack.c.bf16 %v1167, %v1159
    %v1206 = vpack.c.bf16 %v1168, %v1160
    %v1207 = vpack.c.bf16 %v1169, %v1161
    %v1208 = vpack.c.bf16 %v1178, %v1170
    %v1209 = vpack.c.bf16 %v1179, %v1171
    %v1210 = vpack.c.bf16 %v1180, %v1172
    %v1211 = vpack.c.bf16 %v1181, %v1173
    %v1212 = vpack.c.bf16 %v1182, %v1174
    %v1213 = vpack.c.bf16 %v1183, %v1175
    %v1214 = vpack.c.bf16 %v1184, %v1176
    %v1215 = vpack.c.bf16 %v1185, %v1177
    %v1216 = vpack.c.bf16 %v1186, %v1186
    %v1217 = vpack.c.bf16 %v1187, %v1187
    %v1218 = vpack.c.bf16 %v1188, %v1188
    %v1219 = vpack.c.bf16 %v1189, %v1189
    %v1220 = vpack.c.bf16 %v1190, %v1190
    %v1221 = vpack.c.bf16 %v1191, %v1191
    %v1222 = vpack.c.bf16 %v1192, %v1192
    %v1223 = vpack.c.bf16 %v1193, %v1193
    %s1224 = scalar_lea.vmem %s4, 80
    %v1225 = vld [vmem:[%s1224] sm:$0xff]
    %v1226 = vld [vmem:[%s1224 + $0x8] sm:$0xff]
    %v1227 = vld [vmem:[%s1224 + $0x10] sm:$0xff]
    %v1228 = vld [vmem:[%s1224 + $0x18] sm:$0xff]
    %v1229 = vld [vmem:[%s1224 + $0x20] sm:$0xff]
    %1231 = vset.pattern.permute.xlu0 0
    %1232 = vperm.xlu0 %1231, %v1225
    %v1233 = vpop.permute.xlu0 %1232
    %1236 = vset.pattern.permute.xlu0 0
    %1237 = vperm.xlu0 %1236, %v1226
    %v1238 = vpop.permute.xlu0 %1237
    %1241 = vset.pattern.permute.xlu0 0
    %1242 = vperm.xlu0 %1241, %v1227
    %v1243 = vpop.permute.xlu0 %1242
    %1246 = vset.pattern.permute.xlu0 0
    %1247 = vperm.xlu0 %1246, %v1228
    %v1248 = vpop.permute.xlu0 %1247
    %1251 = vset.pattern.permute.xlu0 0
    %1252 = vperm.xlu0 %1251, %v1229
    %v1253 = vpop.permute.xlu0 %1252
    %v1260 = vunpack.c.l.b16 %v1195
    %v1261 = vunpack.c.l.b16 %v1196
    %v1262 = vunpack.c.l.b16 %v1197
    %v1263 = vunpack.c.l.b16 %v1198
    %v1264 = vunpack.c.l.b16 %v1199
    %v1265 = vpack.c.b16 %v1261, %v1260
    %v1266 = vpack.c.b16 %v1263, %v1262
    %v1267 = vpack.c.b16 %v1264, %v1264
    %v1269 = vsel %vm284, %v1265, 0
    %v1272 = vsel %vm284, %v1266, 0
    %v1275 = vsel %vm284, %v1267, 0
    %v1278 = vsel %vm294, %v1216, 0
    %v1281 = vsel %vm294, %v1217, 0
    %v1284 = vsel %vm294, %v1218, 0
    %v1287 = vsel %vm294, %v1219, 0
    %v1290 = vsel %vm294, %v1220, 0
    %v1293 = vsel %vm294, %v1221, 0
    %v1296 = vsel %vm294, %v1222, 0
    %v1299 = vsel %vm294, %v1223, 0
    %1301 = vmatprep.subr.bf16.mxu0 %v1201
    %1302 = vmatpush1.bf16.msra.mxu0 %v1200
    %1303 = vmatprep.subr.bf16.mxu0 %v1209
    %1304 = vmatpush1.bf16.msra.mxu0 %v1208
    %1305 = vmatprep.subr.bf16.mxu0 %v1281
    %1306 = vmatpush1.bf16.msra.mxu0 %v1278
    %1307 = vmatprep.subr.bf16.mxu0 0
    %1308 = vmatpush1.bf16.msra.mxu0 0
    %1309 = vmatprep.subr.bf16.mxu0 0
    %1310 = vmatpush1.bf16.msra.mxu0 0
    %1311 = vmatprep.subr.bf16.mxu0 0
    %1312 = vmatpush1.bf16.msra.mxu0 0
    %1313 = vmatprep.subr.bf16.mxu0 0
    %1314 = vmatpush1.bf16.msra.mxu0 0
    %1315 = vmatprep.subr.bf16.mxu0 0
    %1316 = vmatpush1.bf16.msra.mxu0 0
    %1317 = vmatprep.subr.bf16.mxu0 0
    %1318 = vmatpush1.bf16.msra.mxu0 0
    %1319 = vmatprep.subr.bf16.mxu0 0
    %1320 = vmatpush1.bf16.msra.mxu0 0
    %1321 = vmatprep.subr.bf16.mxu0 0
    %1322 = vmatpush1.bf16.msra.mxu0 0
    %1323 = vmatprep.subr.bf16.mxu0 0
    %1324 = vmatpush1.bf16.msra.mxu0 0
    %1325 = vmatprep.subr.bf16.mxu0 0
    %1326 = vmatpush1.bf16.msra.mxu0 0
    %1327 = vmatprep.subr.bf16.mxu0 0
    %1328 = vmatpush1.bf16.msra.mxu0 0
    %1329 = vmatprep.subr.bf16.mxu0 0
    %1330 = vmatpush1.bf16.msra.mxu0 0
    %1331 = vmatprep.subr.bf16.mxu0 0
    %1332 = vmatpush1.bf16.msra.mxu0 0
    %1333 = vmatprep.mubr.bf16.mxu0 0
    %1334 = vmatmul.mubr.bf16.gmra.mrb[0].mxu0 %v1269
    %v1335 = vpop.f32.mrb[0].mxu0
    %v1336 = vadd.f32 %v1233, %v1335
    %v1337 = vpop.f32.mrb[0].mxu0
    %v1338 = vadd.f32 %v1233, %v1337
    %v1339 = vpop.f32.mrb[0].mxu0
    %v1340 = vadd.f32 %v1238, %v1339
    %v1341 = vpop.f32.mrb[0].mxu0
    %v1342 = vadd.f32 %v1238, %v1341
    %1343 = vmatprep.mubr.bf16.mxu0 0
    %1344 = vmatmul.mubr.bf16.gmra.mrb[0].mxu0 %v1272
    %v1345 = vpop.f32.mrb[0].mxu0
    %v1346 = vadd.f32 %v1243, %v1345
    %v1347 = vpop.f32.mrb[0].mxu0
    %v1348 = vadd.f32 %v1243, %v1347
    %v1349 = vpop.f32.mrb[0].mxu0
    %v1350 = vadd.f32 %v1248, %v1349
    %v1351 = vpop.f32.mrb[0].mxu0
    %v1352 = vadd.f32 %v1248, %v1351
    %1353 = vmatprep.mubr.bf16.mxu0 0
    %1354 = vmatmul.mubr.bf16.gmra.mrb[0].mxu0 %v1275
    %v1355 = vpop.f32.mrb[0].mxu0
    %v1356 = vadd.f32 %v1253, %v1355
    %v1357 = vpop.f32.mrb[0].mxu0
    %v1358 = vadd.f32 %v1253, %v1357
    %v1359 = vpop.f32.mrb[0].mxu0
    %v1360 = vpop.f32.mrb[0].mxu0
    %1361 = vdwg.mxu0
    %1362 = vmatprep.subr.bf16.mxu0 %v1203
    %1363 = vmatpush1.bf16.msra.mxu0 %v1202
    %1364 = vmatprep.subr.bf16.mxu0 %v1211
    %1365 = vmatpush1.bf16.msra.mxu0 %v1210
    %1366 = vmatprep.subr.bf16.mxu0 %v1287
    %1367 = vmatpush1.bf16.msra.mxu0 %v1284
    %1368 = vmatprep.subr.bf16.mxu0 0
    %1369 = vmatpush1.bf16.msra.mxu0 0
    %1370 = vmatprep.subr.bf16.mxu0 0
    %1371 = vmatpush1.bf16.msra.mxu0 0
    %1372 = vmatprep.subr.bf16.mxu0 0
    %1373 = vmatpush1.bf16.msra.mxu0 0
    %1374 = vmatprep.subr.bf16.mxu0 0
    %1375 = vmatpush1.bf16.msra.mxu0 0
    %1376 = vmatprep.subr.bf16.mxu0 0
    %1377 = vmatpush1.bf16.msra.mxu0 0
    %1378 = vmatprep.subr.bf16.mxu0 0
    %1379 = vmatpush1.bf16.msra.mxu0 0
    %1380 = vmatprep.subr.bf16.mxu0 0
    %1381 = vmatpush1.bf16.msra.mxu0 0
    %1382 = vmatprep.subr.bf16.mxu0 0
    %1383 = vmatpush1.bf16.msra.mxu0 0
    %1384 = vmatprep.subr.bf16.mxu0 0
    %1385 = vmatpush1.bf16.msra.mxu0 0
    %1386 = vmatprep.subr.bf16.mxu0 0
    %1387 = vmatpush1.bf16.msra.mxu0 0
    %1388 = vmatprep.subr.bf16.mxu0 0
    %1389 = vmatpush1.bf16.msra.mxu0 0
    %1390 = vmatprep.subr.bf16.mxu0 0
    %1391 = vmatpush1.bf16.msra.mxu0 0
    %1392 = vmatprep.subr.bf16.mxu0 0
    %1393 = vmatpush1.bf16.msra.mxu0 0
    %1394 = vmatprep.mubr.bf16.mxu0 0
    %1395 = vmatmul.mubr.bf16.gmra.mrb[0].mxu0 %v1269
    %v1396 = vpop.f32.mrb[0].mxu0
    %v1397 = vadd.f32 %v1233, %v1396
    %v1398 = vpop.f32.mrb[0].mxu0
    %v1399 = vadd.f32 %v1233, %v1398
    %v1400 = vpop.f32.mrb[0].mxu0
    %v1401 = vadd.f32 %v1238, %v1400
    %v1402 = vpop.f32.mrb[0].mxu0
    %v1403 = vadd.f32 %v1238, %v1402
    %1404 = vmatprep.mubr.bf16.mxu0 0
    %1405 = vmatmul.mubr.bf16.gmra.mrb[0].mxu0 %v1272
    %v1406 = vpop.f32.mrb[0].mxu0
    %v1407 = vadd.f32 %v1243, %v1406
    %v1408 = vpop.f32.mrb[0].mxu0
    %v1409 = vadd.f32 %v1243, %v1408
    %v1410 = vpop.f32.mrb[0].mxu0
    %v1411 = vadd.f32 %v1248, %v1410
    %v1412 = vpop.f32.mrb[0].mxu0
    %v1413 = vadd.f32 %v1248, %v1412
    %1414 = vmatprep.mubr.bf16.mxu0 0
    %1415 = vmatmul.mubr.bf16.gmra.mrb[0].mxu0 %v1275
    %v1416 = vpop.f32.mrb[0].mxu0
    %v1417 = vadd.f32 %v1253, %v1416
    %v1418 = vpop.f32.mrb[0].mxu0
    %v1419 = vadd.f32 %v1253, %v1418
    %v1420 = vpop.f32.mrb[0].mxu0
    %v1421 = vpop.f32.mrb[0].mxu0
    %1422 = vdwg.mxu0
    %1423 = vmatprep.subr.bf16.mxu0 %v1205
    %1424 = vmatpush1.bf16.msra.mxu0 %v1204
    %1425 = vmatprep.subr.bf16.mxu0 %v1213
    %1426 = vmatpush1.bf16.msra.mxu0 %v1212
    %1427 = vmatprep.subr.bf16.mxu0 %v1293
    %1428 = vmatpush1.bf16.msra.mxu0 %v1290
    %1429 = vmatprep.subr.bf16.mxu0 0
    %1430 = vmatpush1.bf16.msra.mxu0 0
    %1431 = vmatprep.subr.bf16.mxu0 0
    %1432 = vmatpush1.bf16.msra.mxu0 0
    %1433 = vmatprep.subr.bf16.mxu0 0
    %1434 = vmatpush1.bf16.msra.mxu0 0
    %1435 = vmatprep.subr.bf16.mxu0 0
    %1436 = vmatpush1.bf16.msra.mxu0 0
    %1437 = vmatprep.subr.bf16.mxu0 0
    %1438 = vmatpush1.bf16.msra.mxu0 0
    %1439 = vmatprep.subr.bf16.mxu0 0
    %1440 = vmatpush1.bf16.msra.mxu0 0
    %1441 = vmatprep.subr.bf16.mxu0 0
    %1442 = vmatpush1.bf16.msra.mxu0 0
    %1443 = vmatprep.subr.bf16.mxu0 0
    %1444 = vmatpush1.bf16.msra.mxu0 0
    %1445 = vmatprep.subr.bf16.mxu0 0
    %1446 = vmatpush1.bf16.msra.mxu0 0
    %1447 = vmatprep.subr.bf16.mxu0 0
    %1448 = vmatpush1.bf16.msra.mxu0 0
    %1449 = vmatprep.subr.bf16.mxu0 0
    %1450 = vmatpush1.bf16.msra.mxu0 0
    %1451 = vmatprep.subr.bf16.mxu0 0
    %1452 = vmatpush1.bf16.msra.mxu0 0
    %1453 = vmatprep.subr.bf16.mxu0 0
    %1454 = vmatpush1.bf16.msra.mxu0 0
    %1455 = vmatprep.mubr.bf16.mxu0 0
    %1456 = vmatmul.mubr.bf16.gmra.mrb[0].mxu0 %v1269
    %v1457 = vpop.f32.mrb[0].mxu0
    %v1458 = vadd.f32 %v1233, %v1457
    %v1459 = vpop.f32.mrb[0].mxu0
    %v1460 = vadd.f32 %v1233, %v1459
    %v1461 = vpop.f32.mrb[0].mxu0
    %v1462 = vadd.f32 %v1238, %v1461
    %v1463 = vpop.f32.mrb[0].mxu0
    %v1464 = vadd.f32 %v1238, %v1463
    %1465 = vmatprep.mubr.bf16.mxu0 0
    %1466 = vmatmul.mubr.bf16.gmra.mrb[0].mxu0 %v1272
    %v1467 = vpop.f32.mrb[0].mxu0
    %v1468 = vadd.f32 %v1243, %v1467
    %v1469 = vpop.f32.mrb[0].mxu0
    %v1470 = vadd.f32 %v1243, %v1469
    %v1471 = vpop.f32.mrb[0].mxu0
    %v1472 = vadd.f32 %v1248, %v1471
    %v1473 = vpop.f32.mrb[0].mxu0
    %v1474 = vadd.f32 %v1248, %v1473
    %1475 = vmatprep.mubr.bf16.mxu0 0
    %1476 = vmatmul.mubr.bf16.gmra.mrb[0].mxu0 %v1275
    %v1477 = vpop.f32.mrb[0].mxu0
    %v1478 = vadd.f32 %v1253, %v1477
    %v1479 = vpop.f32.mrb[0].mxu0
    %v1480 = vadd.f32 %v1253, %v1479
    %v1481 = vpop.f32.mrb[0].mxu0
    %v1482 = vpop.f32.mrb[0].mxu0
    %1483 = vdwg.mxu0
    %1484 = vmatprep.subr.bf16.mxu0 %v1207
    %1485 = vmatpush1.bf16.msra.mxu0 %v1206
    %1486 = vmatprep.subr.bf16.mxu0 %v1215
    %1487 = vmatpush1.bf16.msra.mxu0 %v1214
    %1488 = vmatprep.subr.bf16.mxu0 %v1299
    %1489 = vmatpush1.bf16.msra.mxu0 %v1296
    %1490 = vmatprep.subr.bf16.mxu0 0
    %1491 = vmatpush1.bf16.msra.mxu0 0
    %1492 = vmatprep.subr.bf16.mxu0 0
    %1493 = vmatpush1.bf16.msra.mxu0 0
    %1494 = vmatprep.subr.bf16.mxu0 0
    %1495 = vmatpush1.bf16.msra.mxu0 0
    %1496 = vmatprep.subr.bf16.mxu0 0
    %1497 = vmatpush1.bf16.msra.mxu0 0
    %1498 = vmatprep.subr.bf16.mxu0 0
    %1499 = vmatpush1.bf16.msra.mxu0 0
    %1500 = vmatprep.subr.bf16.mxu0 0
    %1501 = vmatpush1.bf16.msra.mxu0 0
    %1502 = vmatprep.subr.bf16.mxu0 0
    %1503 = vmatpush1.bf16.msra.mxu0 0
    %1504 = vmatprep.subr.bf16.mxu0 0
    %1505 = vmatpush1.bf16.msra.mxu0 0
    %1506 = vmatprep.subr.bf16.mxu0 0
    %1507 = vmatpush1.bf16.msra.mxu0 0
    %1508 = vmatprep.subr.bf16.mxu0 0
    %1509 = vmatpush1.bf16.msra.mxu0 0
    %1510 = vmatprep.subr.bf16.mxu0 0
    %1511 = vmatpush1.bf16.msra.mxu0 0
    %1512 = vmatprep.subr.bf16.mxu0 0
    %1513 = vmatpush1.bf16.msra.mxu0 0
    %1514 = vmatprep.subr.bf16.mxu0 0
    %1515 = vmatpush1.bf16.msra.mxu0 0
    %1516 = vmatprep.mubr.bf16.mxu0 0
    %1517 = vmatmul.mubr.bf16.gmra.mrb[0].mxu0 %v1269
    %v1518 = vpop.f32.mrb[0].mxu0
    %v1519 = vadd.f32 %v1233, %v1518
    %v1520 = vpop.f32.mrb[0].mxu0
    %v1521 = vadd.f32 %v1233, %v1520
    %v1522 = vpop.f32.mrb[0].mxu0
    %v1523 = vadd.f32 %v1238, %v1522
    %v1524 = vpop.f32.mrb[0].mxu0
    %v1525 = vadd.f32 %v1238, %v1524
    %1526 = vmatprep.mubr.bf16.mxu0 0
    %1527 = vmatmul.mubr.bf16.gmra.mrb[0].mxu0 %v1272
    %v1528 = vpop.f32.mrb[0].mxu0
    %v1529 = vadd.f32 %v1243, %v1528
    %v1530 = vpop.f32.mrb[0].mxu0
    %v1531 = vadd.f32 %v1243, %v1530
    %v1532 = vpop.f32.mrb[0].mxu0
    %v1533 = vadd.f32 %v1248, %v1532
    %v1534 = vpop.f32.mrb[0].mxu0
    %v1535 = vadd.f32 %v1248, %v1534
    %1536 = vmatprep.mubr.bf16.mxu0 0
    %1537 = vmatmul.mubr.bf16.gmra.mrb[0].mxu0 %v1275
    %v1538 = vpop.f32.mrb[0].mxu0
    %v1539 = vadd.f32 %v1253, %v1538
    %v1540 = vpop.f32.mrb[0].mxu0
    %v1541 = vadd.f32 %v1253, %v1540
    %v1542 = vpop.f32.mrb[0].mxu0
    %v1543 = vpop.f32.mrb[0].mxu0
    %1544 = vdwg.mxu0
    %v1545 = vmax.f32 %v1336, 0.0
    %v1546 = vmax.f32 %v1338, 0.0
    %v1547 = vmax.f32 %v1397, 0.0
    %v1548 = vmax.f32 %v1399, 0.0
    %v1549 = vmax.f32 %v1458, 0.0
    %v1550 = vmax.f32 %v1460, 0.0
    %v1551 = vmax.f32 %v1519, 0.0
    %v1552 = vmax.f32 %v1521, 0.0
    %v1553 = vmax.f32 %v1340, 0.0
    %v1554 = vmax.f32 %v1342, 0.0
    %v1555 = vmax.f32 %v1401, 0.0
    %v1556 = vmax.f32 %v1403, 0.0
    %v1557 = vmax.f32 %v1462, 0.0
    %v1558 = vmax.f32 %v1464, 0.0
    %v1559 = vmax.f32 %v1523, 0.0
    %v1560 = vmax.f32 %v1525, 0.0
    %v1561 = vmax.f32 %v1346, 0.0
    %v1562 = vmax.f32 %v1348, 0.0
    %v1563 = vmax.f32 %v1407, 0.0
    %v1564 = vmax.f32 %v1409, 0.0
    %v1565 = vmax.f32 %v1468, 0.0
    %v1566 = vmax.f32 %v1470, 0.0
    %v1567 = vmax.f32 %v1529, 0.0
    %v1568 = vmax.f32 %v1531, 0.0
    %v1569 = vmax.f32 %v1350, 0.0
    %v1570 = vmax.f32 %v1352, 0.0
    %v1571 = vmax.f32 %v1411, 0.0
    %v1572 = vmax.f32 %v1413, 0.0
    %v1573 = vmax.f32 %v1472, 0.0
    %v1574 = vmax.f32 %v1474, 0.0
    %v1575 = vmax.f32 %v1533, 0.0
    %v1576 = vmax.f32 %v1535, 0.0
    %v1577 = vmax.f32 %v1356, 0.0
    %v1578 = vmax.f32 %v1358, 0.0
    %v1579 = vmax.f32 %v1417, 0.0
    %v1580 = vmax.f32 %v1419, 0.0
    %v1581 = vmax.f32 %v1478, 0.0
    %v1582 = vmax.f32 %v1480, 0.0
    %v1583 = vmax.f32 %v1539, 0.0
    %v1584 = vmax.f32 %v1541, 0.0
    %v1585 = vmul.f32 %v1545, %v1545
    %v1586 = vmul.f32 %v1546, %v1546
    %v1587 = vmul.f32 %v1547, %v1547
    %v1588 = vmul.f32 %v1548, %v1548
    %v1589 = vmul.f32 %v1549, %v1549
    %v1590 = vmul.f32 %v1550, %v1550
    %v1591 = vmul.f32 %v1551, %v1551
    %v1592 = vmul.f32 %v1552, %v1552
    %v1593 = vmul.f32 %v1553, %v1553
    %v1594 = vmul.f32 %v1554, %v1554
    %v1595 = vmul.f32 %v1555, %v1555
    %v1596 = vmul.f32 %v1556, %v1556
    %v1597 = vmul.f32 %v1557, %v1557
    %v1598 = vmul.f32 %v1558, %v1558
    %v1599 = vmul.f32 %v1559, %v1559
    %v1600 = vmul.f32 %v1560, %v1560
    %v1601 = vmul.f32 %v1561, %v1561
    %v1602 = vmul.f32 %v1562, %v1562
    %v1603 = vmul.f32 %v1563, %v1563
    %v1604 = vmul.f32 %v1564, %v1564
    %v1605 = vmul.f32 %v1565, %v1565
    %v1606 = vmul.f32 %v1566, %v1566
    %v1607 = vmul.f32 %v1567, %v1567
    %v1608 = vmul.f32 %v1568, %v1568
    %v1609 = vmul.f32 %v1569, %v1569
    %v1610 = vmul.f32 %v1570, %v1570
    %v1611 = vmul.f32 %v1571, %v1571
    %v1612 = vmul.f32 %v1572, %v1572
    %v1613 = vmul.f32 %v1573, %v1573
    %v1614 = vmul.f32 %v1574, %v1574
    %v1615 = vmul.f32 %v1575, %v1575
    %v1616 = vmul.f32 %v1576, %v1576
    %v1617 = vmul.f32 %v1577, %v1577
    %v1618 = vmul.f32 %v1578, %v1578
    %v1619 = vmul.f32 %v1579, %v1579
    %v1620 = vmul.f32 %v1580, %v1580
    %v1621 = vmul.f32 %v1581, %v1581
    %v1622 = vmul.f32 %v1582, %v1582
    %v1623 = vmul.f32 %v1583, %v1583
    %v1624 = vmul.f32 %v1584, %v1584
    %v1625 = vmul.f32 %v1585, %v1545
    %v1626 = vmul.f32 %v1586, %v1546
    %v1627 = vmul.f32 %v1587, %v1547
    %v1628 = vmul.f32 %v1588, %v1548
    %v1629 = vmul.f32 %v1589, %v1549
    %v1630 = vmul.f32 %v1590, %v1550
    %v1631 = vmul.f32 %v1591, %v1551
    %v1632 = vmul.f32 %v1592, %v1552
    %v1633 = vmul.f32 %v1593, %v1553
    %v1634 = vmul.f32 %v1594, %v1554
    %v1635 = vmul.f32 %v1595, %v1555
    %v1636 = vmul.f32 %v1596, %v1556
    %v1637 = vmul.f32 %v1597, %v1557
    %v1638 = vmul.f32 %v1598, %v1558
    %v1639 = vmul.f32 %v1599, %v1559
    %v1640 = vmul.f32 %v1600, %v1560
    %v1641 = vmul.f32 %v1601, %v1561
    %v1642 = vmul.f32 %v1602, %v1562
    %v1643 = vmul.f32 %v1603, %v1563
    %v1644 = vmul.f32 %v1604, %v1564
    %v1645 = vmul.f32 %v1605, %v1565
    %v1646 = vmul.f32 %v1606, %v1566
    %v1647 = vmul.f32 %v1607, %v1567
    %v1648 = vmul.f32 %v1608, %v1568
    %v1649 = vmul.f32 %v1609, %v1569
    %v1650 = vmul.f32 %v1610, %v1570
    %v1651 = vmul.f32 %v1611, %v1571
    %v1652 = vmul.f32 %v1612, %v1572
    %v1653 = vmul.f32 %v1613, %v1573
    %v1654 = vmul.f32 %v1614, %v1574
    %v1655 = vmul.f32 %v1615, %v1575
    %v1656 = vmul.f32 %v1616, %v1576
    %v1657 = vmul.f32 %v1617, %v1577
    %v1658 = vmul.f32 %v1618, %v1578
    %v1659 = vmul.f32 %v1619, %v1579
    %v1660 = vmul.f32 %v1620, %v1580
    %v1661 = vmul.f32 %v1621, %v1581
    %v1662 = vmul.f32 %v1622, %v1582
    %v1663 = vmul.f32 %v1623, %v1583
    %v1664 = vmul.f32 %v1624, %v1584
    %s1665 = scalar_lea.vmem %s3, 60
    %v1666 = vld [vmem:[%s1665] sm:$0xf]
    %v1667 = vld [vmem:[%s1665 + $0x4] sm:$0xf]
    %v1668 = vld [vmem:[%s1665 + $0x8] sm:$0xf]
    %v1669 = vld [vmem:[%s1665 + $0xc] sm:$0xf]
    %v1670 = vld [vmem:[%s1665 + $0x10] sm:$0xf]
    %v1671 = vpack.c.bf16 %v1633, %v1625
    %v1672 = vpack.c.bf16 %v1634, %v1626
    %v1673 = vpack.c.bf16 %v1635, %v1627
    %v1674 = vpack.c.bf16 %v1636, %v1628
    %v1675 = vpack.c.bf16 %v1637, %v1629
    %v1676 = vpack.c.bf16 %v1638, %v1630
    %v1677 = vpack.c.bf16 %v1639, %v1631
    %v1678 = vpack.c.bf16 %v1640, %v1632
    %v1679 = vpack.c.bf16 %v1649, %v1641
    %v1680 = vpack.c.bf16 %v1650, %v1642
    %v1681 = vpack.c.bf16 %v1651, %v1643
    %v1682 = vpack.c.bf16 %v1652, %v1644
    %v1683 = vpack.c.bf16 %v1653, %v1645
    %v1684 = vpack.c.bf16 %v1654, %v1646
    %v1685 = vpack.c.bf16 %v1655, %v1647
    %v1686 = vpack.c.bf16 %v1656, %v1648
    %v1687 = vpack.c.bf16 %v1657, %v1657
    %v1688 = vpack.c.bf16 %v1658, %v1658
    %v1689 = vpack.c.bf16 %v1659, %v1659
    %v1690 = vpack.c.bf16 %v1660, %v1660
    %v1691 = vpack.c.bf16 %v1661, %v1661
    %v1692 = vpack.c.bf16 %v1662, %v1662
    %v1693 = vpack.c.bf16 %v1663, %v1663
    %v1694 = vpack.c.bf16 %v1664, %v1664
    %s1695 = scalar_lea.vmem %s4, 120
    %v1696 = vld [vmem:[%s1695] sm:$0xff]
    %v1697 = vld [vmem:[%s1695 + $0x8] sm:$0xff]
    %v1698 = vld [vmem:[%s1695 + $0x10] sm:$0xff]
    %v1699 = vld [vmem:[%s1695 + $0x18] sm:$0xff]
    %v1700 = vld [vmem:[%s1695 + $0x20] sm:$0xff]
    %1702 = vset.pattern.permute.xlu0 0
    %1703 = vperm.xlu0 %1702, %v1696
    %v1704 = vpop.permute.xlu0 %1703
    %1707 = vset.pattern.permute.xlu0 0
    %1708 = vperm.xlu0 %1707, %v1697
    %v1709 = vpop.permute.xlu0 %1708
    %1712 = vset.pattern.permute.xlu0 0
    %1713 = vperm.xlu0 %1712, %v1698
    %v1714 = vpop.permute.xlu0 %1713
    %1717 = vset.pattern.permute.xlu0 0
    %1718 = vperm.xlu0 %1717, %v1699
    %v1719 = vpop.permute.xlu0 %1718
    %1722 = vset.pattern.permute.xlu0 0
    %1723 = vperm.xlu0 %1722, %v1700
    %v1724 = vpop.permute.xlu0 %1723
    %v1731 = vunpack.c.l.b16 %v1666
    %v1732 = vunpack.c.l.b16 %v1667
    %v1733 = vunpack.c.l.b16 %v1668
    %v1734 = vunpack.c.l.b16 %v1669
    %v1735 = vunpack.c.l.b16 %v1670
    %v1736 = vpack.c.b16 %v1732, %v1731
    %v1737 = vpack.c.b16 %v1734, %v1733
    %v1738 = vpack.c.b16 %v1735, %v1735
    %v1740 = vsel %vm284, %v1736, 0
    %v1743 = vsel %vm284, %v1737, 0
    %v1746 = vsel %vm284, %v1738, 0
    %v1749 = vsel %vm294, %v1687, 0
    %v1752 = vsel %vm294, %v1688, 0
    %v1755 = vsel %vm294, %v1689, 0
    %v1758 = vsel %vm294, %v1690, 0
    %v1761 = vsel %vm294, %v1691, 0
    %v1764 = vsel %vm294, %v1692, 0
    %v1767 = vsel %vm294, %v1693, 0
    %v1770 = vsel %vm294, %v1694, 0
    %1772 = vmatprep.subr.bf16.mxu0 %v1672
    %1773 = vmatpush1.bf16.msra.mxu0 %v1671
    %1774 = vmatprep.subr.bf16.mxu0 %v1680
    %1775 = vmatpush1.bf16.msra.mxu0 %v1679
    %1776 = vmatprep.subr.bf16.mxu0 %v1752
    %1777 = vmatpush1.bf16.msra.mxu0 %v1749
    %1778 = vmatprep.subr.bf16.mxu0 0
    %1779 = vmatpush1.bf16.msra.mxu0 0
    %1780 = vmatprep.subr.bf16.mxu0 0
    %1781 = vmatpush1.bf16.msra.mxu0 0
    %1782 = vmatprep.subr.bf16.mxu0 0
    %1783 = vmatpush1.bf16.msra.mxu0 0
    %1784 = vmatprep.subr.bf16.mxu0 0
    %1785 = vmatpush1.bf16.msra.mxu0 0
    %1786 = vmatprep.subr.bf16.mxu0 0
    %1787 = vmatpush1.bf16.msra.mxu0 0
    %1788 = vmatprep.subr.bf16.mxu0 0
    %1789 = vmatpush1.bf16.msra.mxu0 0
    %1790 = vmatprep.subr.bf16.mxu0 0
    %1791 = vmatpush1.bf16.msra.mxu0 0
    %1792 = vmatprep.subr.bf16.mxu0 0
    %1793 = vmatpush1.bf16.msra.mxu0 0
    %1794 = vmatprep.subr.bf16.mxu0 0
    %1795 = vmatpush1.bf16.msra.mxu0 0
    %1796 = vmatprep.subr.bf16.mxu0 0
    %1797 = vmatpush1.bf16.msra.mxu0 0
    %1798 = vmatprep.subr.bf16.mxu0 0
    %1799 = vmatpush1.bf16.msra.mxu0 0
    %1800 = vmatprep.subr.bf16.mxu0 0
    %1801 = vmatpush1.bf16.msra.mxu0 0
    %1802 = vmatprep.subr.bf16.mxu0 0
    %1803 = vmatpush1.bf16.msra.mxu0 0
    %1804 = vmatprep.mubr.bf16.mxu0 0
    %1805 = vmatmul.mubr.bf16.gmra.mrb[0].mxu0 %v1740
    %v1806 = vpop.f32.mrb[0].mxu0
    %v1807 = vadd.f32 %v1704, %v1806
    %v1808 = vpop.f32.mrb[0].mxu0
    %v1809 = vadd.f32 %v1704, %v1808
    %v1810 = vpop.f32.mrb[0].mxu0
    %v1811 = vadd.f32 %v1709, %v1810
    %v1812 = vpop.f32.mrb[0].mxu0
    %v1813 = vadd.f32 %v1709, %v1812
    %1814 = vmatprep.mubr.bf16.mxu0 0
    %1815 = vmatmul.mubr.bf16.gmra.mrb[0].mxu0 %v1743
    %v1816 = vpop.f32.mrb[0].mxu0
    %v1817 = vadd.f32 %v1714, %v1816
    %v1818 = vpop.f32.mrb[0].mxu0
    %v1819 = vadd.f32 %v1714, %v1818
    %v1820 = vpop.f32.mrb[0].mxu0
    %v1821 = vadd.f32 %v1719, %v1820
    %v1822 = vpop.f32.mrb[0].mxu0
    %v1823 = vadd.f32 %v1719, %v1822
    %1824 = vmatprep.mubr.bf16.mxu0 0
    %1825 = vmatmul.mubr.bf16.gmra.mrb[0].mxu0 %v1746
    %v1826 = vpop.f32.mrb[0].mxu0
    %v1827 = vadd.f32 %v1724, %v1826
    %v1828 = vpop.f32.mrb[0].mxu0
    %v1829 = vadd.f32 %v1724, %v1828
    %v1830 = vpop.f32.mrb[0].mxu0
    %v1831 = vpop.f32.mrb[0].mxu0
    %1832 = vdwg.mxu0
    %1833 = vmatprep.subr.bf16.mxu0 %v1674
    %1834 = vmatpush1.bf16.msra.mxu0 %v1673
    %1835 = vmatprep.subr.bf16.mxu0 %v1682
    %1836 = vmatpush1.bf16.msra.mxu0 %v1681
    %1837 = vmatprep.subr.bf16.mxu0 %v1758
    %1838 = vmatpush1.bf16.msra.mxu0 %v1755
    %1839 = vmatprep.subr.bf16.mxu0 0
    %1840 = vmatpush1.bf16.msra.mxu0 0
    %1841 = vmatprep.subr.bf16.mxu0 0
    %1842 = vmatpush1.bf16.msra.mxu0 0
    %1843 = vmatprep.subr.bf16.mxu0 0
    %1844 = vmatpush1.bf16.msra.mxu0 0
    %1845 = vmatprep.subr.bf16.mxu0 0
    %1846 = vmatpush1.bf16.msra.mxu0 0
    %1847 = vmatprep.subr.bf16.mxu0 0
    %1848 = vmatpush1.bf16.msra.mxu0 0
    %1849 = vmatprep.subr.bf16.mxu0 0
    %1850 = vmatpush1.bf16.msra.mxu0 0
    %1851 = vmatprep.subr.bf16.mxu0 0
    %1852 = vmatpush1.bf16.msra.mxu0 0
    %1853 = vmatprep.subr.bf16.mxu0 0
    %1854 = vmatpush1.bf16.msra.mxu0 0
    %1855 = vmatprep.subr.bf16.mxu0 0
    %1856 = vmatpush1.bf16.msra.mxu0 0
    %1857 = vmatprep.subr.bf16.mxu0 0
    %1858 = vmatpush1.bf16.msra.mxu0 0
    %1859 = vmatprep.subr.bf16.mxu0 0
    %1860 = vmatpush1.bf16.msra.mxu0 0
    %1861 = vmatprep.subr.bf16.mxu0 0
    %1862 = vmatpush1.bf16.msra.mxu0 0
    %1863 = vmatprep.subr.bf16.mxu0 0
    %1864 = vmatpush1.bf16.msra.mxu0 0
    %1865 = vmatprep.mubr.bf16.mxu0 0
    %1866 = vmatmul.mubr.bf16.gmra.mrb[0].mxu0 %v1740
    %v1867 = vpop.f32.mrb[0].mxu0
    %v1868 = vadd.f32 %v1704, %v1867
    %v1869 = vpop.f32.mrb[0].mxu0
    %v1870 = vadd.f32 %v1704, %v1869
    %v1871 = vpop.f32.mrb[0].mxu0
    %v1872 = vadd.f32 %v1709, %v1871
    %v1873 = vpop.f32.mrb[0].mxu0
    %v1874 = vadd.f32 %v1709, %v1873
    %1875 = vmatprep.mubr.bf16.mxu0 0
    %1876 = vmatmul.mubr.bf16.gmra.mrb[0].mxu0 %v1743
    %v1877 = vpop.f32.mrb[0].mxu0
    %v1878 = vadd.f32 %v1714, %v1877
    %v1879 = vpop.f32.mrb[0].mxu0
    %v1880 = vadd.f32 %v1714, %v1879
    %v1881 = vpop.f32.mrb[0].mxu0
    %v1882 = vadd.f32 %v1719, %v1881
    %v1883 = vpop.f32.mrb[0].mxu0
    %v1884 = vadd.f32 %v1719, %v1883
    %1885 = vmatprep.mubr.bf16.mxu0 0
    %1886 = vmatmul.mubr.bf16.gmra.mrb[0].mxu0 %v1746
    %v1887 = vpop.f32.mrb[0].mxu0
    %v1888 = vadd.f32 %v1724, %v1887
    %v1889 = vpop.f32.mrb[0].mxu0
    %v1890 = vadd.f32 %v1724, %v1889
    %v1891 = vpop.f32.mrb[0].mxu0
    %v1892 = vpop.f32.mrb[0].mxu0
    %1893 = vdwg.mxu0
    %1894 = vmatprep.subr.bf16.mxu0 %v1676
    %1895 = vmatpush1.bf16.msra.mxu0 %v1675
    %1896 = vmatprep.subr.bf16.mxu0 %v1684
    %1897 = vmatpush1.bf16.msra.mxu0 %v1683
    %1898 = vmatprep.subr.bf16.mxu0 %v1764
    %1899 = vmatpush1.bf16.msra.mxu0 %v1761
    %1900 = vmatprep.subr.bf16.mxu0 0
    %1901 = vmatpush1.bf16.msra.mxu0 0
    %1902 = vmatprep.subr.bf16.mxu0 0
    %1903 = vmatpush1.bf16.msra.mxu0 0
    %1904 = vmatprep.subr.bf16.mxu0 0
    %1905 = vmatpush1.bf16.msra.mxu0 0
    %1906 = vmatprep.subr.bf16.mxu0 0
    %1907 = vmatpush1.bf16.msra.mxu0 0
    %1908 = vmatprep.subr.bf16.mxu0 0
    %1909 = vmatpush1.bf16.msra.mxu0 0
    %1910 = vmatprep.subr.bf16.mxu0 0
    %1911 = vmatpush1.bf16.msra.mxu0 0
    %1912 = vmatprep.subr.bf16.mxu0 0
    %1913 = vmatpush1.bf16.msra.mxu0 0
    %1914 = vmatprep.subr.bf16.mxu0 0
    %1915 = vmatpush1.bf16.msra.mxu0 0
    %1916 = vmatprep.subr.bf16.mxu0 0
    %1917 = vmatpush1.bf16.msra.mxu0 0
    %1918 = vmatprep.subr.bf16.mxu0 0
    %1919 = vmatpush1.bf16.msra.mxu0 0
    %1920 = vmatprep.subr.bf16.mxu0 0
    %1921 = vmatpush1.bf16.msra.mxu0 0
    %1922 = vmatprep.subr.bf16.mxu0 0
    %1923 = vmatpush1.bf16.msra.mxu0 0
    %1924 = vmatprep.subr.bf16.mxu0 0
    %1925 = vmatpush1.bf16.msra.mxu0 0
    %1926 = vmatprep.mubr.bf16.mxu0 0
    %1927 = vmatmul.mubr.bf16.gmra.mrb[0].mxu0 %v1740
    %v1928 = vpop.f32.mrb[0].mxu0
    %v1929 = vadd.f32 %v1704, %v1928
    %v1930 = vpop.f32.mrb[0].mxu0
    %v1931 = vadd.f32 %v1704, %v1930
    %v1932 = vpop.f32.mrb[0].mxu0
    %v1933 = vadd.f32 %v1709, %v1932
    %v1934 = vpop.f32.mrb[0].mxu0
    %v1935 = vadd.f32 %v1709, %v1934
    %1936 = vmatprep.mubr.bf16.mxu0 0
    %1937 = vmatmul.mubr.bf16.gmra.mrb[0].mxu0 %v1743
    %v1938 = vpop.f32.mrb[0].mxu0
    %v1939 = vadd.f32 %v1714, %v1938
    %v1940 = vpop.f32.mrb[0].mxu0
    %v1941 = vadd.f32 %v1714, %v1940
    %v1942 = vpop.f32.mrb[0].mxu0
    %v1943 = vadd.f32 %v1719, %v1942
    %v1944 = vpop.f32.mrb[0].mxu0
    %v1945 = vadd.f32 %v1719, %v1944
    %1946 = vmatprep.mubr.bf16.mxu0 0
    %1947 = vmatmul.mubr.bf16.gmra.mrb[0].mxu0 %v1746
    %v1948 = vpop.f32.mrb[0].mxu0
    %v1949 = vadd.f32 %v1724, %v1948
    %v1950 = vpop.f32.mrb[0].mxu0
    %v1951 = vadd.f32 %v1724, %v1950
    %v1952 = vpop.f32.mrb[0].mxu0
    %v1953 = vpop.f32.mrb[0].mxu0
    %1954 = vdwg.mxu0
    %1955 = vmatprep.subr.bf16.mxu0 %v1678
    %1956 = vmatpush1.bf16.msra.mxu0 %v1677
    %1957 = vmatprep.subr.bf16.mxu0 %v1686
    %1958 = vmatpush1.bf16.msra.mxu0 %v1685
    %1959 = vmatprep.subr.bf16.mxu0 %v1770
    %1960 = vmatpush1.bf16.msra.mxu0 %v1767
    %1961 = vmatprep.subr.bf16.mxu0 0
    %1962 = vmatpush1.bf16.msra.mxu0 0
    %1963 = vmatprep.subr.bf16.mxu0 0
    %1964 = vmatpush1.bf16.msra.mxu0 0
    %1965 = vmatprep.subr.bf16.mxu0 0
    %1966 = vmatpush1.bf16.msra.mxu0 0
    %1967 = vmatprep.subr.bf16.mxu0 0
    %1968 = vmatpush1.bf16.msra.mxu0 0
    %1969 = vmatprep.subr.bf16.mxu0 0
    %1970 = vmatpush1.bf16.msra.mxu0 0
    %1971 = vmatprep.subr.bf16.mxu0 0
    %1972 = vmatpush1.bf16.msra.mxu0 0
    %1973 = vmatprep.subr.bf16.mxu0 0
    %1974 = vmatpush1.bf16.msra.mxu0 0
    %1975 = vmatprep.subr.bf16.mxu0 0
    %1976 = vmatpush1.bf16.msra.mxu0 0
    %1977 = vmatprep.subr.bf16.mxu0 0
    %1978 = vmatpush1.bf16.msra.mxu0 0
    %1979 = vmatprep.subr.bf16.mxu0 0
    %1980 = vmatpush1.bf16.msra.mxu0 0
    %1981 = vmatprep.subr.bf16.mxu0 0
    %1982 = vmatpush1.bf16.msra.mxu0 0
    %1983 = vmatprep.subr.bf16.mxu0 0
    %1984 = vmatpush1.bf16.msra.mxu0 0
    %1985 = vmatprep.subr.bf16.mxu0 0
    %1986 = vmatpush1.bf16.msra.mxu0 0
    %1987 = vmatprep.mubr.bf16.mxu0 0
    %1988 = vmatmul.mubr.bf16.gmra.mrb[0].mxu0 %v1740
    %v1989 = vpop.f32.mrb[0].mxu0
    %v1990 = vadd.f32 %v1704, %v1989
    %v1991 = vpop.f32.mrb[0].mxu0
    %v1992 = vadd.f32 %v1704, %v1991
    %v1993 = vpop.f32.mrb[0].mxu0
    %v1994 = vadd.f32 %v1709, %v1993
    %v1995 = vpop.f32.mrb[0].mxu0
    %v1996 = vadd.f32 %v1709, %v1995
    %1997 = vmatprep.mubr.bf16.mxu0 0
    %1998 = vmatmul.mubr.bf16.gmra.mrb[0].mxu0 %v1743
    %v1999 = vpop.f32.mrb[0].mxu0
    %v2000 = vadd.f32 %v1714, %v1999
    %v2001 = vpop.f32.mrb[0].mxu0
    %v2002 = vadd.f32 %v1714, %v2001
    %v2003 = vpop.f32.mrb[0].mxu0
    %v2004 = vadd.f32 %v1719, %v2003
    %v2005 = vpop.f32.mrb[0].mxu0
    %v2006 = vadd.f32 %v1719, %v2005
    %2007 = vmatprep.mubr.bf16.mxu0 0
    %2008 = vmatmul.mubr.bf16.gmra.mrb[0].mxu0 %v1746
    %v2009 = vpop.f32.mrb[0].mxu0
    %v2010 = vadd.f32 %v1724, %v2009
    %v2011 = vpop.f32.mrb[0].mxu0
    %v2012 = vadd.f32 %v1724, %v2011
    %v2013 = vpop.f32.mrb[0].mxu0
    %v2014 = vpop.f32.mrb[0].mxu0
    %2015 = vdwg.mxu0
    %v2016 = vmax.f32 %v1807, 0.0
    %v2017 = vmax.f32 %v1809, 0.0
    %v2018 = vmax.f32 %v1868, 0.0
    %v2019 = vmax.f32 %v1870, 0.0
    %v2020 = vmax.f32 %v1929, 0.0
    %v2021 = vmax.f32 %v1931, 0.0
    %v2022 = vmax.f32 %v1990, 0.0
    %v2023 = vmax.f32 %v1992, 0.0
    %v2024 = vmax.f32 %v1811, 0.0
    %v2025 = vmax.f32 %v1813, 0.0
    %v2026 = vmax.f32 %v1872, 0.0
    %v2027 = vmax.f32 %v1874, 0.0
    %v2028 = vmax.f32 %v1933, 0.0
    %v2029 = vmax.f32 %v1935, 0.0
    %v2030 = vmax.f32 %v1994, 0.0
    %v2031 = vmax.f32 %v1996, 0.0
    %v2032 = vmax.f32 %v1817, 0.0
    %v2033 = vmax.f32 %v1819, 0.0
    %v2034 = vmax.f32 %v1878, 0.0
    %v2035 = vmax.f32 %v1880, 0.0
    %v2036 = vmax.f32 %v1939, 0.0
    %v2037 = vmax.f32 %v1941, 0.0
    %v2038 = vmax.f32 %v2000, 0.0
    %v2039 = vmax.f32 %v2002, 0.0
    %v2040 = vmax.f32 %v1821, 0.0
    %v2041 = vmax.f32 %v1823, 0.0
    %v2042 = vmax.f32 %v1882, 0.0
    %v2043 = vmax.f32 %v1884, 0.0
    %v2044 = vmax.f32 %v1943, 0.0
    %v2045 = vmax.f32 %v1945, 0.0
    %v2046 = vmax.f32 %v2004, 0.0
    %v2047 = vmax.f32 %v2006, 0.0
    %v2048 = vmax.f32 %v1827, 0.0
    %v2049 = vmax.f32 %v1829, 0.0
    %v2050 = vmax.f32 %v1888, 0.0
    %v2051 = vmax.f32 %v1890, 0.0
    %v2052 = vmax.f32 %v1949, 0.0
    %v2053 = vmax.f32 %v1951, 0.0
    %v2054 = vmax.f32 %v2010, 0.0
    %v2055 = vmax.f32 %v2012, 0.0
    %v2056 = vmul.f32 %v2016, %v2016
    %v2057 = vmul.f32 %v2017, %v2017
    %v2058 = vmul.f32 %v2018, %v2018
    %v2059 = vmul.f32 %v2019, %v2019
    %v2060 = vmul.f32 %v2020, %v2020
    %v2061 = vmul.f32 %v2021, %v2021
    %v2062 = vmul.f32 %v2022, %v2022
    %v2063 = vmul.f32 %v2023, %v2023
    %v2064 = vmul.f32 %v2024, %v2024
    %v2065 = vmul.f32 %v2025, %v2025
    %v2066 = vmul.f32 %v2026, %v2026
    %v2067 = vmul.f32 %v2027, %v2027
    %v2068 = vmul.f32 %v2028, %v2028
    %v2069 = vmul.f32 %v2029, %v2029
    %v2070 = vmul.f32 %v2030, %v2030
    %v2071 = vmul.f32 %v2031, %v2031
    %v2072 = vmul.f32 %v2032, %v2032
    %v2073 = vmul.f32 %v2033, %v2033
    %v2074 = vmul.f32 %v2034, %v2034
    %v2075 = vmul.f32 %v2035, %v2035
    %v2076 = vmul.f32 %v2036, %v2036
    %v2077 = vmul.f32 %v2037, %v2037
    %v2078 = vmul.f32 %v2038, %v2038
    %v2079 = vmul.f32 %v2039, %v2039
    %v2080 = vmul.f32 %v2040, %v2040
    %v2081 = vmul.f32 %v2041, %v2041
    %v2082 = vmul.f32 %v2042, %v2042
    %v2083 = vmul.f32 %v2043, %v2043
    %v2084 = vmul.f32 %v2044, %v2044
    %v2085 = vmul.f32 %v2045, %v2045
    %v2086 = vmul.f32 %v2046, %v2046
    %v2087 = vmul.f32 %v2047, %v2047
    %v2088 = vmul.f32 %v2048, %v2048
    %v2089 = vmul.f32 %v2049, %v2049
    %v2090 = vmul.f32 %v2050, %v2050
    %v2091 = vmul.f32 %v2051, %v2051
    %v2092 = vmul.f32 %v2052, %v2052
    %v2093 = vmul.f32 %v2053, %v2053
    %v2094 = vmul.f32 %v2054, %v2054
    %v2095 = vmul.f32 %v2055, %v2055
    %v2096 = vmul.f32 %v2056, %v2016
    %v2097 = vmul.f32 %v2057, %v2017
    %v2098 = vmul.f32 %v2058, %v2018
    %v2099 = vmul.f32 %v2059, %v2019
    %v2100 = vmul.f32 %v2060, %v2020
    %v2101 = vmul.f32 %v2061, %v2021
    %v2102 = vmul.f32 %v2062, %v2022
    %v2103 = vmul.f32 %v2063, %v2023
    %v2104 = vmul.f32 %v2064, %v2024
    %v2105 = vmul.f32 %v2065, %v2025
    %v2106 = vmul.f32 %v2066, %v2026
    %v2107 = vmul.f32 %v2067, %v2027
    %v2108 = vmul.f32 %v2068, %v2028
    %v2109 = vmul.f32 %v2069, %v2029
    %v2110 = vmul.f32 %v2070, %v2030
    %v2111 = vmul.f32 %v2071, %v2031
    %v2112 = vmul.f32 %v2072, %v2032
    %v2113 = vmul.f32 %v2073, %v2033
    %v2114 = vmul.f32 %v2074, %v2034
    %v2115 = vmul.f32 %v2075, %v2035
    %v2116 = vmul.f32 %v2076, %v2036
    %v2117 = vmul.f32 %v2077, %v2037
    %v2118 = vmul.f32 %v2078, %v2038
    %v2119 = vmul.f32 %v2079, %v2039
    %v2120 = vmul.f32 %v2080, %v2040
    %v2121 = vmul.f32 %v2081, %v2041
    %v2122 = vmul.f32 %v2082, %v2042
    %v2123 = vmul.f32 %v2083, %v2043
    %v2124 = vmul.f32 %v2084, %v2044
    %v2125 = vmul.f32 %v2085, %v2045
    %v2126 = vmul.f32 %v2086, %v2046
    %v2127 = vmul.f32 %v2087, %v2047
    %v2128 = vmul.f32 %v2088, %v2048
    %v2129 = vmul.f32 %v2089, %v2049
    %v2130 = vmul.f32 %v2090, %v2050
    %v2131 = vmul.f32 %v2091, %v2051
    %v2132 = vmul.f32 %v2092, %v2052
    %v2133 = vmul.f32 %v2093, %v2053
    %v2134 = vmul.f32 %v2094, %v2054
    %v2135 = vmul.f32 %v2095, %v2055
    %v2136 = vadd.f32 %v1154, %v2096
    %v2137 = vadd.f32 %v1155, %v2097
    %v2138 = vadd.f32 %v1156, %v2098
    %v2139 = vadd.f32 %v1157, %v2099
    %v2140 = vadd.f32 %v1158, %v2100
    %v2141 = vadd.f32 %v1159, %v2101
    %v2142 = vadd.f32 %v1160, %v2102
    %v2143 = vadd.f32 %v1161, %v2103
    %v2144 = vadd.f32 %v1162, %v2104
    %v2145 = vadd.f32 %v1163, %v2105
    %v2146 = vadd.f32 %v1164, %v2106
    %v2147 = vadd.f32 %v1165, %v2107
    %v2148 = vadd.f32 %v1166, %v2108
    %v2149 = vadd.f32 %v1167, %v2109
    %v2150 = vadd.f32 %v1168, %v2110
    %v2151 = vadd.f32 %v1169, %v2111
    %v2152 = vadd.f32 %v1170, %v2112
    %v2153 = vadd.f32 %v1171, %v2113
    %v2154 = vadd.f32 %v1172, %v2114
    %v2155 = vadd.f32 %v1173, %v2115
    %v2156 = vadd.f32 %v1174, %v2116
    %v2157 = vadd.f32 %v1175, %v2117
    %v2158 = vadd.f32 %v1176, %v2118
    %v2159 = vadd.f32 %v1177, %v2119
    %v2160 = vadd.f32 %v1178, %v2120
    %v2161 = vadd.f32 %v1179, %v2121
    %v2162 = vadd.f32 %v1180, %v2122
    %v2163 = vadd.f32 %v1181, %v2123
    %v2164 = vadd.f32 %v1182, %v2124
    %v2165 = vadd.f32 %v1183, %v2125
    %v2166 = vadd.f32 %v1184, %v2126
    %v2167 = vadd.f32 %v1185, %v2127
    %v2168 = vadd.f32 %v1186, %v2128
    %v2169 = vadd.f32 %v1187, %v2129
    %v2170 = vadd.f32 %v1188, %v2130
    %v2171 = vadd.f32 %v1189, %v2131
    %v2172 = vadd.f32 %v1190, %v2132
    %v2173 = vadd.f32 %v1191, %v2133
    %v2174 = vadd.f32 %v1192, %v2134
    %v2175 = vadd.f32 %v1193, %v2135
    %v2176 = vld [vmem:[%s5] sm:$0xff]
    %v2177 = vld [vmem:[%s5 + $0x8] sm:$0xff]
    %v2178 = vld [vmem:[%s5 + $0x10] sm:$0xff]
    %v2179 = vld [vmem:[%s5 + $0x18] sm:$0xff]
    %v2180 = vld [vmem:[%s5 + $0x20] sm:$0xff]
    %2182 = vset.pattern.permute.xlu0 0
    %2183 = vperm.xlu0 %2182, %v2176
    %v2184 = vpop.permute.xlu0 %2183
    %2187 = vset.pattern.permute.xlu0 0
    %2188 = vperm.xlu0 %2187, %v2177
    %v2189 = vpop.permute.xlu0 %2188
    %2192 = vset.pattern.permute.xlu0 0
    %2193 = vperm.xlu0 %2192, %v2178
    %v2194 = vpop.permute.xlu0 %2193
    %2197 = vset.pattern.permute.xlu0 0
    %2198 = vperm.xlu0 %2197, %v2179
    %v2199 = vpop.permute.xlu0 %2198
    %2202 = vset.pattern.permute.xlu0 0
    %2203 = vperm.xlu0 %2202, %v2180
    %v2204 = vpop.permute.xlu0 %2203
    %v2206 = vmul.f32 %v2184, %v2136
    %v2207 = vmul.f32 %v2184, %v2137
    %v2208 = vmul.f32 %v2184, %v2138
    %v2209 = vmul.f32 %v2184, %v2139
    %v2210 = vmul.f32 %v2184, %v2140
    %v2211 = vmul.f32 %v2184, %v2141
    %v2212 = vmul.f32 %v2184, %v2142
    %v2213 = vmul.f32 %v2184, %v2143
    %v2214 = vmul.f32 %v2189, %v2144
    %v2215 = vmul.f32 %v2189, %v2145
    %v2216 = vmul.f32 %v2189, %v2146
    %v2217 = vmul.f32 %v2189, %v2147
    %v2218 = vmul.f32 %v2189, %v2148
    %v2219 = vmul.f32 %v2189, %v2149
    %v2220 = vmul.f32 %v2189, %v2150
    %v2221 = vmul.f32 %v2189, %v2151
    %v2222 = vmul.f32 %v2194, %v2152
    %v2223 = vmul.f32 %v2194, %v2153
    %v2224 = vmul.f32 %v2194, %v2154
    %v2225 = vmul.f32 %v2194, %v2155
    %v2226 = vmul.f32 %v2194, %v2156
    %v2227 = vmul.f32 %v2194, %v2157
    %v2228 = vmul.f32 %v2194, %v2158
    %v2229 = vmul.f32 %v2194, %v2159
    %v2230 = vmul.f32 %v2199, %v2160
    %v2231 = vmul.f32 %v2199, %v2161
    %v2232 = vmul.f32 %v2199, %v2162
    %v2233 = vmul.f32 %v2199, %v2163
    %v2234 = vmul.f32 %v2199, %v2164
    %v2235 = vmul.f32 %v2199, %v2165
    %v2236 = vmul.f32 %v2199, %v2166
    %v2237 = vmul.f32 %v2199, %v2167
    %v2238 = vmul.f32 %v2204, %v2168
    %v2239 = vmul.f32 %v2204, %v2169
    %v2240 = vmul.f32 %v2204, %v2170
    %v2241 = vmul.f32 %v2204, %v2171
    %v2242 = vmul.f32 %v2204, %v2172
    %v2243 = vmul.f32 %v2204, %v2173
    %v2244 = vmul.f32 %v2204, %v2174
    %v2245 = vmul.f32 %v2204, %v2175
    %v2246 = vadd.f32 %v2206, %v2214
    %v2247 = vadd.f32 %v2246, %v2222
    %v2248 = vadd.f32 %v2247, %v2230
    %v2249 = vadd.f32 %v2248, %v2238
    %v2250 = vrot.slane %v2249, 4
    %v2251 = vadd.f32 %v2249, %v2250
    %v2252 = vrot.slane %v2251, 2
    %v2253 = vadd.f32 %v2251, %v2252
    %v2254 = vrot.slane %v2253, 1
    %v2255 = vadd.f32 %v2253, %v2254
    %v2256 = vadd.f32 %v2207, %v2215
    %v2257 = vadd.f32 %v2256, %v2223
    %v2258 = vadd.f32 %v2257, %v2231
    %v2259 = vadd.f32 %v2258, %v2239
    %v2260 = vrot.slane %v2259, 4
    %v2261 = vadd.f32 %v2259, %v2260
    %v2262 = vrot.slane %v2261, 2
    %v2263 = vadd.f32 %v2261, %v2262
    %v2264 = vrot.slane %v2263, 1
    %v2265 = vadd.f32 %v2263, %v2264
    %v2266 = vadd.f32 %v2208, %v2216
    %v2267 = vadd.f32 %v2266, %v2224
    %v2268 = vadd.f32 %v2267, %v2232
    %v2269 = vadd.f32 %v2268, %v2240
    %v2270 = vrot.slane %v2269, 4
    %v2271 = vadd.f32 %v2269, %v2270
    %v2272 = vrot.slane %v2271, 2
    %v2273 = vadd.f32 %v2271, %v2272
    %v2274 = vrot.slane %v2273, 1
    %v2275 = vadd.f32 %v2273, %v2274
    %v2276 = vadd.f32 %v2209, %v2217
    %v2277 = vadd.f32 %v2276, %v2225
    %v2278 = vadd.f32 %v2277, %v2233
    %v2279 = vadd.f32 %v2278, %v2241
    %v2280 = vrot.slane %v2279, 4
    %v2281 = vadd.f32 %v2279, %v2280
    %v2282 = vrot.slane %v2281, 2
    %v2283 = vadd.f32 %v2281, %v2282
    %v2284 = vrot.slane %v2283, 1
    %v2285 = vadd.f32 %v2283, %v2284
    %v2286 = vadd.f32 %v2210, %v2218
    %v2287 = vadd.f32 %v2286, %v2226
    %v2288 = vadd.f32 %v2287, %v2234
    %v2289 = vadd.f32 %v2288, %v2242
    %v2290 = vrot.slane %v2289, 4
    %v2291 = vadd.f32 %v2289, %v2290
    %v2292 = vrot.slane %v2291, 2
    %v2293 = vadd.f32 %v2291, %v2292
    %v2294 = vrot.slane %v2293, 1
    %v2295 = vadd.f32 %v2293, %v2294
    %v2296 = vadd.f32 %v2211, %v2219
    %v2297 = vadd.f32 %v2296, %v2227
    %v2298 = vadd.f32 %v2297, %v2235
    %v2299 = vadd.f32 %v2298, %v2243
    %v2300 = vrot.slane %v2299, 4
    %v2301 = vadd.f32 %v2299, %v2300
    %v2302 = vrot.slane %v2301, 2
    %v2303 = vadd.f32 %v2301, %v2302
    %v2304 = vrot.slane %v2303, 1
    %v2305 = vadd.f32 %v2303, %v2304
    %v2306 = vadd.f32 %v2212, %v2220
    %v2307 = vadd.f32 %v2306, %v2228
    %v2308 = vadd.f32 %v2307, %v2236
    %v2309 = vadd.f32 %v2308, %v2244
    %v2310 = vrot.slane %v2309, 4
    %v2311 = vadd.f32 %v2309, %v2310
    %v2312 = vrot.slane %v2311, 2
    %v2313 = vadd.f32 %v2311, %v2312
    %v2314 = vrot.slane %v2313, 1
    %v2315 = vadd.f32 %v2313, %v2314
    %v2316 = vadd.f32 %v2213, %v2221
    %v2317 = vadd.f32 %v2316, %v2229
    %v2318 = vadd.f32 %v2317, %v2237
    %v2319 = vadd.f32 %v2318, %v2245
    %v2320 = vrot.slane %v2319, 4
    %v2321 = vadd.f32 %v2319, %v2320
    %v2322 = vrot.slane %v2321, 2
    %v2323 = vadd.f32 %v2321, %v2322
    %v2324 = vrot.slane %v2323, 1
    %v2325 = vadd.f32 %v2323, %v2324
    %v2326 = vld [vmem:[#allocation2] sm:$0x1]
    %2328 = vset.pattern.permute.xlu0 0
    %2329 = vperm.xlu0 %2328, %v2326
    %v2330 = vpop.permute.xlu0 %2329
    %v2332 = vlaneseq
    %v2333 = vshrl.u32 %v2332, 7
    %v2334 = vsub.s32 0, %v2333
    %v2335 = vrot.slane %v2330, %v2334
    %v2336 = vadd.f32 %v2255, %v2335
    %v2337 = vadd.f32 %v2265, %v2335
    %v2338 = vadd.f32 %v2275, %v2335
    %v2339 = vadd.f32 %v2285, %v2335
    %v2340 = vadd.f32 %v2295, %v2335
    %v2341 = vadd.f32 %v2305, %v2335
    %v2342 = vadd.f32 %v2315, %v2335
    %v2343 = vadd.f32 %v2325, %v2335
    %v2344 = vsub.f32 1.0, %v30
    %v2345 = vmul.f32 %v30, %v2344
    %v2354 = vcombine.low %v2336, %v2337
    %v2355 = vcombine.low %v2338, %v2339
    %v2356 = vcombine.low %v2340, %v2341
    %v2357 = vcombine.low %v2342, %v2343
    %v2359 = vunpack.c.l.s4 1966171168
    %v2360 = vunpack.c.0.s8 %v2359
    %v2361 = vlaneseq
    %v2362 = vshrl.u32 %v2361, 7
    %v2363 = vsub.s32 %v2360, %v2362
    %v2364 = vrot.slane %v2354, %v2363
    %v2366 = vunpack.c.l.s4 1966171168
    %v2367 = vunpack.c.0.s8 %v2366
    %v2368 = vlaneseq
    %v2369 = vshrl.u32 %v2368, 7
    %v2370 = vsub.s32 %v2367, %v2369
    %v2371 = vrot.slane %v2355, %v2370
    %v2373 = vunpack.c.l.s4 1966171168
    %v2374 = vunpack.c.0.s8 %v2373
    %v2375 = vlaneseq
    %v2376 = vshrl.u32 %v2375, 7
    %v2377 = vsub.s32 %v2374, %v2376
    %v2378 = vrot.slane %v2356, %v2377
    %v2380 = vunpack.c.l.s4 1966171168
    %v2381 = vunpack.c.0.s8 %v2380
    %v2382 = vlaneseq
    %v2383 = vshrl.u32 %v2382, 7
    %v2384 = vsub.s32 %v2381, %v2383
    %v2385 = vrot.slane %v2357, %v2384
    %v2386 = vcombine.low %v2364, %v2371
    %v2387 = vcombine.low %v2378, %v2385
    %v2389 = vunpack.c.l.s4 1966171168
    %v2390 = vunpack.c.0.s8 %v2389
    %v2391 = vlaneseq
    %v2392 = vshrl.u32 %v2391, 7
    %v2393 = vsub.s32 %v2390, %v2392
    %v2394 = vrot.slane %v2386, %v2393
    %v2396 = vunpack.c.l.s4 1966171168
    %v2397 = vunpack.c.0.s8 %v2396
    %v2398 = vlaneseq
    %v2399 = vshrl.u32 %v2398, 7
    %v2400 = vsub.s32 %v2397, %v2399
    %v2401 = vrot.slane %v2387, %v2400
    %v2402 = vcombine.low %v2394, %v2401
    %v2404 = vmul.f32 %v2345, %v2402
    %2405 = vst [vmem:[#allocation3] sm:$0xff] %v2404
    // Predicated region
    $region30: #{tpu_custom_call.1} parent=1 // pred_check
      _
    $region31: #{tpu_custom_call.1} parent=1 // pred_check_branch
      %2407 = sbr.rel (0) target = $region33
    $region32: #{tpu_custom_call.1} parent=1 // pred_region
      %s2409 = ssub.s32 128, 128
      %2410 = vsyncadd [#allocation4], %s2409
      %s2412 = sshll.u32 [#allocation3], 4
      %s2413 = int_to_ptr.vmem [resolvable:$true] %s2412
      %2415 = dma.vmem_to_hbm [thread:$0]  %s2413, 128, %s7, [#allocation4]
    $region33: #{tpu_custom_call.1} parent=1 // pred_fallthru
      _
    // Predicated region
    $region34: #{tpu_custom_call.1} parent=1 // pred_check
      _
    $region35: #{tpu_custom_call.1} parent=1 // pred_check_branch
      %2417 = sbr.rel (0) target = $region37
    $region36: #{tpu_custom_call.1} parent=1 // pred_region
      %2418 = dma.done [#allocation4], 128
    $region37: #{tpu_custom_call.1} parent=1 // pred_fallthru
      _
    %2419 = vsyncpa [#allocation4], 1

</llo_original>
